<compile_context>
chip_gen: v7x
topology: tpu7x:2x2x1
jax: 0.10.0
libtpu: 0.0.40
codegen_flags: <defaults>
</compile_context>

<pallas_src>
import jax
import jax.numpy as jnp
from jax.experimental import pallas as pl
from jax.experimental.pallas import tpu as pltpu


# ------------------------------ fused kernel --------------------------------

def _fused_learner_kernel(pt_ref, cw_ref, cb_ref, w1_ref, b1_ref, w2_ref,
                          b2_ref, o_ref):
    """One grid step = one batch element; every intermediate stays on-chip.

    pt_ref : [CKK, HW]           patches^T for this batch element
    cw_ref : [C_out, CKK]        conv weight, PyTorch flatten order
    cb_ref : [C_out, 1]          conv bias (broadcast over lanes)
    w1_ref : [C_out, HW, HIDDEN] fc1 weight grouped by conv output channel
    b1_ref : [1, HIDDEN]
    w2_ref : [HIDDEN, CLASSES]
    b2_ref : [1, CLASSES]
    o_ref  : [1, 1, CLASSES]
    """
    # --- E: conv as a lane-dense transposed matmul on the MXU ---
    # [C_out, CKK] @ [CKK, HW] -> [C_out, HW]; lanes = HW (multiple of 128).
    h_t = jnp.dot(cw_ref[...], pt_ref[...], preferred_element_type=jnp.float32)
    h_t = jnp.maximum(h_t + cb_ref[...], 0.0)             # [C_out, HW]

    # --- E: fc1 + ReLU ---
    # Row c of h_t is exactly the NCHW-flatten slice [c*HW:(c+1)*HW] of the
    # encoder features, so the 2048-long contraction is a sum of per-channel
    # matmuls. Feeding the full [C_out, HW] LHS keeps all 8 sublanes busy on
    # the MXU (same pass cost as a 1-row LHS); row c of the result is the
    # contribution we need.
    acc = b1_ref[...]                                     # [1, HIDDEN]
    for c in range(w1_ref.shape[0]):                      # static unroll, C_out
        contrib = jnp.dot(h_t, w1_ref[c], preferred_element_type=jnp.float32)
        acc = acc + contrib[c:c + 1, :]
    z = jnp.maximum(acc, 0.0)                             # [1, HIDDEN]

    # --- M: fc2 + numerically-stable log-softmax ---
    logits = jnp.dot(z, w2_ref[...], preferred_element_type=jnp.float32)
    logits = logits + b2_ref[...]                         # [1, CLASSES]
    m = jnp.max(logits, axis=-1, keepdims=True)
    s = logits - m
    lse = jnp.log(jnp.sum(jnp.exp(s), axis=-1, keepdims=True))
    o_ref[...] = jnp.reshape(s - lse, o_ref.shape)


# ------------------------------ forward wrapper ------------------------------

def learner_forward(params, x):
    """Forward pass y = M(E(x)); x is NCHW float32."""
    B, C_in, H, W = x.shape
    C_out, _, K, _ = params["conv_w"].shape
    HW = H * W
    CKK = C_in * K * K
    HIDDEN = params["fc1_w"].shape[1]
    CLASSES = params["fc2_w"].shape[1]
    pad = K // 2

    # --- XLA-side prep (tiny; fuses into one producer fusion) ---
    # im2col, produced directly in transposed ([CKK, B*HW]) layout so the conv
    # matmul output is lane-dense and there is no standalone activation
    # transpose afterwards.
    # TODO(synk): for large B*H*W move the patch extraction into the kernel
    # (manual DMA of the padded NCHW tile + 9 shifted accumulations) to avoid
    # the 9x HBM materialization of the input.
    xp = jnp.pad(x, ((0, 0), (0, 0), (pad, pad), (pad, pad)))
    cols = [xp[:, :, kh:kh + H, kw:kw + W] for kh in range(K) for kw in range(K)]
    pt = jnp.stack(cols, axis=2)                           # [B, C_in, K*K, H, W]
    patches_t = pt.transpose(1, 2, 0, 3, 4).reshape(CKK, B * HW)

    conv_w_flat = params["conv_w"].reshape(C_out, CKK)     # PyTorch (C_in,kh,kw) order
    conv_b_col = params["conv_b"][:, None]                 # [C_out, 1]
    # Rows of the transposed conv output are channel-major, i.e. already in
    # PyTorch NCHW-flatten order, so the flatten permutation folds into a pure
    # (weights-only) reshape of fc1_w — no activation data movement at all.
    fc1_w_g = params["fc1_w"].reshape(C_out, HW, HIDDEN)   # [C_out, HW, HIDDEN]
    fc1_b_row = params["fc1_b"][None, :]                   # [1, HIDDEN]
    fc2_w = params["fc2_w"]                                # [HIDDEN, CLASSES]
    fc2_b_row = params["fc2_b"][None, :]                   # [1, CLASSES]

    flops = 2 * (C_out * CKK * B * HW + B * C_out * HW * HIDDEN
                 + B * HIDDEN * CLASSES)
    bytes_accessed = 4 * (patches_t.size + conv_w_flat.size + conv_b_col.size
                          + fc1_w_g.size + fc1_b_row.size + fc2_w.size
                          + fc2_b_row.size + B * CLASSES)

    y3 = pl.pallas_call(
        _fused_learner_kernel,
        out_shape=jax.ShapeDtypeStruct((B, 1, CLASSES), jnp.float32),
        grid=(B,),
        in_specs=[
            pl.BlockSpec((CKK, HW), lambda b: (0, b)),            # per-batch patch slab
            pl.BlockSpec((C_out, CKK), lambda b: (0, 0)),         # weights: constant block
            pl.BlockSpec((C_out, 1), lambda b: (0, 0)),           #   index -> VMEM-resident
            pl.BlockSpec((C_out, HW, HIDDEN), lambda b: (0, 0, 0)),
            pl.BlockSpec((1, HIDDEN), lambda b: (0, 0)),
            pl.BlockSpec((HIDDEN, CLASSES), lambda b: (0, 0)),
            pl.BlockSpec((1, CLASSES), lambda b: (0, 0)),
        ],
        out_specs=pl.BlockSpec((1, 1, CLASSES), lambda b: (b, 0, 0)),
        compiler_params=pltpu.CompilerParams(
            dimension_semantics=("parallel",),   # megacore shards the batch on v7x
            vmem_limit_bytes=32 * 1024 * 1024,
        ),
        cost_estimate=pl.CostEstimate(
            flops=flops,
            transcendentals=B * (CLASSES + 1),
            bytes_accessed=bytes_accessed,
        ),
    )(patches_t, conv_w_flat, conv_b_col, fc1_w_g, fc1_b_row, fc2_w, fc2_b_row)

    return y3.reshape(B, CLASSES)


# ------------------------------ plain-JAX reference --------------------------

def reference_forward(params, x):
    """Independent XLA reference (uses lax.conv, not the im2col path)."""
    hp = jax.lax.Precision.HIGHEST
    h = jax.lax.conv_general_dilated(
        x, params["conv_w"], window_strides=(1, 1), padding=((1, 1), (1, 1)),
        dimension_numbers=("NCHW", "OIHW", "NCHW"), precision=hp)
    h = jnp.maximum(h + params["conv_b"][None, :, None, None], 0.0)
    h = h.reshape(x.shape[0], -1)                          # PyTorch NCHW flatten
    z = jnp.maximum(jnp.dot(h, params["fc1_w"], precision=hp)
                    + params["fc1_b"][None, :], 0.0)
    logits = jnp.dot(z, params["fc2_w"], precision=hp) + params["fc2_b"][None, :]
    return jax.nn.log_softmax(logits, axis=-1)


# ----------------------------------- main ------------------------------------

if __name__ == "__main__":
    B, C_in, H, W = 2, 4, 16, 16
    C_out, K, HIDDEN, CLASSES = 8, 3, 32, 10

    key = jax.random.PRNGKey(0)
    k_x, k_cw, k_cb, k_w1, k_b1, k_w2, k_b2 = jax.random.split(key, 7)

    x = jax.random.normal(k_x, (B, C_in, H, W), dtype=jnp.float32)

    params = {
        "conv_w": 0.1 * jax.random.normal(k_cw, (C_out, C_in, K, K), jnp.float32),
        "conv_b": 0.1 * jax.random.normal(k_cb, (C_out,), jnp.float32),
        "fc1_w": 0.05 * jax.random.normal(k_w1, (C_out * H * W, HIDDEN), jnp.float32),
        "fc1_b": 0.05 * jax.random.normal(k_b1, (HIDDEN,), jnp.float32),
        "fc2_w": 0.1 * jax.random.normal(k_w2, (HIDDEN, CLASSES), jnp.float32),
        "fc2_b": 0.1 * jax.random.normal(k_b2, (CLASSES,), jnp.float32),
    }

    y = jax.jit(learner_forward)(params, x)
    y = jax.block_until_ready(y)

    y_ref = reference_forward(params, x)
    assert y.shape == (B, CLASSES)
    assert jnp.allclose(y, y_ref, atol=1e-3, rtol=1e-3), "Pallas output mismatch"
    # log_softmax rows should sum to 1 in prob space
    assert jnp.allclose(jnp.sum(jnp.exp(y), axis=-1), 1.0, atol=1e-3)

    print("KERNEL_OK")
</pallas_src>

<mosaic_0001>
module attributes {stable_mosaic.version = 11 : i64} {
  func.func @_fused_learner_kernel(%arg0: i32, %arg1: memref<36x256xf32, #tpu.memory_space<vmem>>, %arg2: memref<8x36xf32, #tpu.memory_space<vmem>>, %arg3: memref<8x1xf32, #tpu.memory_space<vmem>>, %arg4: memref<8x256x32xf32, #tpu.memory_space<vmem>>, %arg5: memref<1x32xf32, #tpu.memory_space<vmem>>, %arg6: memref<32x10xf32, #tpu.memory_space<vmem>>, %arg7: memref<1x10xf32, #tpu.memory_space<vmem>>, %arg8: memref<1x1x10xf32, #tpu.memory_space<vmem>>) attributes {dimension_semantics = [#tpu.dimension_semantics<parallel>], iteration_bounds = array<i64: 2>, scalar_prefetch = 0 : i64, scratch_operands = 0 : i64, tpu.core_type = #tpu.core_type<tc>, window_params = [{transform_indices = @transform_0, window_bounds = array<i64: 36, 256>}, {pipeline_mode = #tpu.pipeline_mode<synchronous>, transform_indices = @transform_1, window_bounds = array<i64: 8, 36>}, {pipeline_mode = #tpu.pipeline_mode<synchronous>, transform_indices = @transform_2, window_bounds = array<i64: 8, 1>}, {pipeline_mode = #tpu.pipeline_mode<synchronous>, transform_indices = @transform_3, window_bounds = array<i64: 8, 256, 32>}, {pipeline_mode = #tpu.pipeline_mode<synchronous>, transform_indices = @transform_4, window_bounds = array<i64: 1, 32>}, {pipeline_mode = #tpu.pipeline_mode<synchronous>, transform_indices = @transform_5, window_bounds = array<i64: 32, 10>}, {pipeline_mode = #tpu.pipeline_mode<synchronous>, transform_indices = @transform_6, window_bounds = array<i64: 1, 10>}, {transform_indices = @transform_7, window_bounds = array<i64: 1, 1, 10>}]} {
    %c0 = arith.constant 0 : index
    %c0_0 = arith.constant 0 : index
    %0 = vector.load %arg2[%c0, %c0_0] : memref<8x36xf32, #tpu.memory_space<vmem>>, vector<8x36xf32>
    %c0_1 = arith.constant 0 : index
    %c0_2 = arith.constant 0 : index
    %1 = vector.load %arg1[%c0_1, %c0_2] : memref<36x256xf32, #tpu.memory_space<vmem>>, vector<36x256xf32>
    %cst = arith.constant dense<0.000000e+00> : vector<8x256xf32>
    %2 = tpu.matmul %0, %1, %cst {dimension_numbers = #tpu.dot_dimension_numbers<[1], [0], [0], [1], [0, 0, 1, 1], [], []>} : vector<8x36xf32>, vector<36x256xf32>, vector<8x256xf32> -> vector<8x256xf32>
    %c0_3 = arith.constant 0 : index
    %c0_4 = arith.constant 0 : index
    %3 = vector.load %arg3[%c0_3, %c0_4] : memref<8x1xf32, #tpu.memory_space<vmem>>, vector<8x1xf32>
    %4 = vector.broadcast %3 : vector<8x1xf32> to vector<8x256xf32>
    %5 = arith.addf %2, %4 : vector<8x256xf32>
    %cst_5 = arith.constant 0.000000e+00 : f32
    %6 = vector.broadcast %cst_5 : f32 to vector<8x256xf32>
    %7 = arith.maximumf %5, %6 : vector<8x256xf32>
    %c0_6 = arith.constant 0 : index
    %c0_7 = arith.constant 0 : index
    %8 = vector.load %arg5[%c0_6, %c0_7] : memref<1x32xf32, #tpu.memory_space<vmem>>, vector<1x32xf32>
    %c0_8 = arith.constant 0 : index
    %c0_9 = arith.constant 0 : index
    %c0_10 = arith.constant 0 : index
    %9 = vector.load %arg4[%c0_8, %c0_9, %c0_10] : memref<8x256x32xf32, #tpu.memory_space<vmem>>, vector<1x256x32xf32>
    %10 = vector.shape_cast %9 : vector<1x256x32xf32> to vector<256x32xf32>
    %cst_11 = arith.constant dense<0.000000e+00> : vector<8x32xf32>
    %11 = tpu.matmul %7, %10, %cst_11 {dimension_numbers = #tpu.dot_dimension_numbers<[1], [0], [0], [1], [0, 0, 1, 1], [], []>} : vector<8x256xf32>, vector<256x32xf32>, vector<8x32xf32> -> vector<8x32xf32>
    %12 = vector.extract_strided_slice %11 {offsets = [0, 0], sizes = [1, 32], strides = [1, 1]} : vector<8x32xf32> to vector<1x32xf32>
    %13 = arith.addf %8, %12 : vector<1x32xf32>
    %c1 = arith.constant 1 : index
    %c0_12 = arith.constant 0 : index
    %c0_13 = arith.constant 0 : index
    %14 = vector.load %arg4[%c1, %c0_12, %c0_13] : memref<8x256x32xf32, #tpu.memory_space<vmem>>, vector<1x256x32xf32>
    %15 = vector.shape_cast %14 : vector<1x256x32xf32> to vector<256x32xf32>
    %cst_14 = arith.constant dense<0.000000e+00> : vector<8x32xf32>
    %16 = tpu.matmul %7, %15, %cst_14 {dimension_numbers = #tpu.dot_dimension_numbers<[1], [0], [0], [1], [0, 0, 1, 1], [], []>} : vector<8x256xf32>, vector<256x32xf32>, vector<8x32xf32> -> vector<8x32xf32>
    %17 = vector.extract_strided_slice %16 {offsets = [1, 0], sizes = [1, 32], strides = [1, 1]} : vector<8x32xf32> to vector<1x32xf32>
    %18 = arith.addf %13, %17 : vector<1x32xf32>
    %c2 = arith.constant 2 : index
    %c0_15 = arith.constant 0 : index
    %c0_16 = arith.constant 0 : index
    %19 = vector.load %arg4[%c2, %c0_15, %c0_16] : memref<8x256x32xf32, #tpu.memory_space<vmem>>, vector<1x256x32xf32>
    %20 = vector.shape_cast %19 : vector<1x256x32xf32> to vector<256x32xf32>
    %cst_17 = arith.constant dense<0.000000e+00> : vector<8x32xf32>
    %21 = tpu.matmul %7, %20, %cst_17 {dimension_numbers = #tpu.dot_dimension_numbers<[1], [0], [0], [1], [0, 0, 1, 1], [], []>} : vector<8x256xf32>, vector<256x32xf32>, vector<8x32xf32> -> vector<8x32xf32>
    %22 = vector.extract_strided_slice %21 {offsets = [2, 0], sizes = [1, 32], strides = [1, 1]} : vector<8x32xf32> to vector<1x32xf32>
    %23 = arith.addf %18, %22 : vector<1x32xf32>
    %c3 = arith.constant 3 : index
    %c0_18 = arith.constant 0 : index
    %c0_19 = arith.constant 0 : index
    %24 = vector.load %arg4[%c3, %c0_18, %c0_19] : memref<8x256x32xf32, #tpu.memory_space<vmem>>, vector<1x256x32xf32>
    %25 = vector.shape_cast %24 : vector<1x256x32xf32> to vector<256x32xf32>
    %cst_20 = arith.constant dense<0.000000e+00> : vector<8x32xf32>
    %26 = tpu.matmul %7, %25, %cst_20 {dimension_numbers = #tpu.dot_dimension_numbers<[1], [0], [0], [1], [0, 0, 1, 1], [], []>} : vector<8x256xf32>, vector<256x32xf32>, vector<8x32xf32> -> vector<8x32xf32>
    %27 = vector.extract_strided_slice %26 {offsets = [3, 0], sizes = [1, 32], strides = [1, 1]} : vector<8x32xf32> to vector<1x32xf32>
    %28 = arith.addf %23, %27 : vector<1x32xf32>
    %c4 = arith.constant 4 : index
    %c0_21 = arith.constant 0 : index
    %c0_22 = arith.constant 0 : index
    %29 = vector.load %arg4[%c4, %c0_21, %c0_22] : memref<8x256x32xf32, #tpu.memory_space<vmem>>, vector<1x256x32xf32>
    %30 = vector.shape_cast %29 : vector<1x256x32xf32> to vector<256x32xf32>
    %cst_23 = arith.constant dense<0.000000e+00> : vector<8x32xf32>
    %31 = tpu.matmul %7, %30, %cst_23 {dimension_numbers = #tpu.dot_dimension_numbers<[1], [0], [0], [1], [0, 0, 1, 1], [], []>} : vector<8x256xf32>, vector<256x32xf32>, vector<8x32xf32> -> vector<8x32xf32>
    %32 = vector.extract_strided_slice %31 {offsets = [4, 0], sizes = [1, 32], strides = [1, 1]} : vector<8x32xf32> to vector<1x32xf32>
    %33 = arith.addf %28, %32 : vector<1x32xf32>
    %c5 = arith.constant 5 : index
    %c0_24 = arith.constant 0 : index
    %c0_25 = arith.constant 0 : index
    %34 = vector.load %arg4[%c5, %c0_24, %c0_25] : memref<8x256x32xf32, #tpu.memory_space<vmem>>, vector<1x256x32xf32>
    %35 = vector.shape_cast %34 : vector<1x256x32xf32> to vector<256x32xf32>
    %cst_26 = arith.constant dense<0.000000e+00> : vector<8x32xf32>
    %36 = tpu.matmul %7, %35, %cst_26 {dimension_numbers = #tpu.dot_dimension_numbers<[1], [0], [0], [1], [0, 0, 1, 1], [], []>} : vector<8x256xf32>, vector<256x32xf32>, vector<8x32xf32> -> vector<8x32xf32>
    %37 = vector.extract_strided_slice %36 {offsets = [5, 0], sizes = [1, 32], strides = [1, 1]} : vector<8x32xf32> to vector<1x32xf32>
    %38 = arith.addf %33, %37 : vector<1x32xf32>
    %c6 = arith.constant 6 : index
    %c0_27 = arith.constant 0 : index
    %c0_28 = arith.constant 0 : index
    %39 = vector.load %arg4[%c6, %c0_27, %c0_28] : memref<8x256x32xf32, #tpu.memory_space<vmem>>, vector<1x256x32xf32>
    %40 = vector.shape_cast %39 : vector<1x256x32xf32> to vector<256x32xf32>
    %cst_29 = arith.constant dense<0.000000e+00> : vector<8x32xf32>
    %41 = tpu.matmul %7, %40, %cst_29 {dimension_numbers = #tpu.dot_dimension_numbers<[1], [0], [0], [1], [0, 0, 1, 1], [], []>} : vector<8x256xf32>, vector<256x32xf32>, vector<8x32xf32> -> vector<8x32xf32>
    %42 = vector.extract_strided_slice %41 {offsets = [6, 0], sizes = [1, 32], strides = [1, 1]} : vector<8x32xf32> to vector<1x32xf32>
    %43 = arith.addf %38, %42 : vector<1x32xf32>
    %c7 = arith.constant 7 : index
    %c0_30 = arith.constant 0 : index
    %c0_31 = arith.constant 0 : index
    %44 = vector.load %arg4[%c7, %c0_30, %c0_31] : memref<8x256x32xf32, #tpu.memory_space<vmem>>, vector<1x256x32xf32>
    %45 = vector.shape_cast %44 : vector<1x256x32xf32> to vector<256x32xf32>
    %cst_32 = arith.constant dense<0.000000e+00> : vector<8x32xf32>
    %46 = tpu.matmul %7, %45, %cst_32 {dimension_numbers = #tpu.dot_dimension_numbers<[1], [0], [0], [1], [0, 0, 1, 1], [], []>} : vector<8x256xf32>, vector<256x32xf32>, vector<8x32xf32> -> vector<8x32xf32>
    %47 = vector.extract_strided_slice %46 {offsets = [7, 0], sizes = [1, 32], strides = [1, 1]} : vector<8x32xf32> to vector<1x32xf32>
    %48 = arith.addf %43, %47 : vector<1x32xf32>
    %cst_33 = arith.constant 0.000000e+00 : f32
    %49 = vector.broadcast %cst_33 : f32 to vector<1x32xf32>
    %50 = arith.maximumf %48, %49 : vector<1x32xf32>
    %c0_34 = arith.constant 0 : index
    %c0_35 = arith.constant 0 : index
    %51 = vector.load %arg6[%c0_34, %c0_35] : memref<32x10xf32, #tpu.memory_space<vmem>>, vector<32x10xf32>
    %cst_36 = arith.constant dense<0.000000e+00> : vector<1x10xf32>
    %52 = tpu.matmul %50, %51, %cst_36 {dimension_numbers = #tpu.dot_dimension_numbers<[1], [0], [0], [1], [0, 0, 1, 1], [], []>} : vector<1x32xf32>, vector<32x10xf32>, vector<1x10xf32> -> vector<1x10xf32>
    %c0_37 = arith.constant 0 : index
    %c0_38 = arith.constant 0 : index
    %53 = vector.load %arg7[%c0_37, %c0_38] : memref<1x10xf32, #tpu.memory_space<vmem>>, vector<1x10xf32>
    %54 = arith.addf %52, %53 : vector<1x10xf32>
    %cst_39 = arith.constant dense<0xFF800000> : vector<1xf32>
    %55 = vector.multi_reduction <maximumf>, %54, %cst_39 [1] : vector<1x10xf32> to vector<1xf32>
    %56 = vector.shape_cast %55 : vector<1xf32> to vector<1x1xf32>
    %57 = vector.broadcast %56 : vector<1x1xf32> to vector<1x10xf32>
    %58 = arith.subf %54, %57 : vector<1x10xf32>
    %59 = math.exp %58 : vector<1x10xf32>
    %cst_40 = arith.constant dense<0.000000e+00> : vector<1xf32>
    %60 = vector.multi_reduction <add>, %59, %cst_40 [1] : vector<1x10xf32> to vector<1xf32>
    %61 = vector.shape_cast %60 : vector<1xf32> to vector<1x1xf32>
    %62 = math.log %61 : vector<1x1xf32>
    %63 = vector.broadcast %62 : vector<1x1xf32> to vector<1x10xf32>
    %64 = arith.subf %58, %63 : vector<1x10xf32>
    %65 = vector.shape_cast %64 : vector<1x10xf32> to vector<1x1x10xf32>
    %c0_41 = arith.constant 0 : index
    %c0_42 = arith.constant 0 : index
    %c0_43 = arith.constant 0 : index
    %66 = vector.load %arg8[%c0_41, %c0_42, %c0_43] : memref<1x1x10xf32, #tpu.memory_space<vmem>>, vector<1x1x10xf32>
    tpu.vector_store %arg8[%c0_41, %c0_42, %c0_43], %65 {strides = array<i32>} : memref<1x1x10xf32, #tpu.memory_space<vmem>>, vector<1x1x10xf32>,
    return
  }
  func.func @transform_0(%arg0: i32) -> (i32, i32) {
    %c0_i32 = arith.constant 0 : i32
    %c0_i32_0 = arith.constant 0 : i32
    return %c0_i32, %arg0 : i32, i32
  }
  func.func @transform_1(%arg0: i32) -> (i32, i32) {
    %c0_i32 = arith.constant 0 : i32
    %c0_i32_0 = arith.constant 0 : i32
    %c0_i32_1 = arith.constant 0 : i32
    return %c0_i32, %c0_i32_0 : i32, i32
  }
  func.func @transform_2(%arg0: i32) -> (i32, i32) {
    %c0_i32 = arith.constant 0 : i32
    %c0_i32_0 = arith.constant 0 : i32
    %c0_i32_1 = arith.constant 0 : i32
    return %c0_i32, %c0_i32_0 : i32, i32
  }
  func.func @transform_3(%arg0: i32) -> (i32, i32, i32) {
    %c0_i32 = arith.constant 0 : i32
    %c0_i32_0 = arith.constant 0 : i32
    %c0_i32_1 = arith.constant 0 : i32
    %c0_i32_2 = arith.constant 0 : i32
    return %c0_i32, %c0_i32_0, %c0_i32_1 : i32, i32, i32
  }
  func.func @transform_4(%arg0: i32) -> (i32, i32) {
    %c0_i32 = arith.constant 0 : i32
    %c0_i32_0 = arith.constant 0 : i32
    %c0_i32_1 = arith.constant 0 : i32
    return %c0_i32, %c0_i32_0 : i32, i32
  }
  func.func @transform_5(%arg0: i32) -> (i32, i32) {
    %c0_i32 = arith.constant 0 : i32
    %c0_i32_0 = arith.constant 0 : i32
    %c0_i32_1 = arith.constant 0 : i32
    return %c0_i32, %c0_i32_0 : i32, i32
  }
  func.func @transform_6(%arg0: i32) -> (i32, i32) {
    %c0_i32 = arith.constant 0 : i32
    %c0_i32_0 = arith.constant 0 : i32
    %c0_i32_1 = arith.constant 0 : i32
    return %c0_i32, %c0_i32_0 : i32, i32
  }
  func.func @transform_7(%arg0: i32) -> (i32, i32, i32) {
    %c0_i32 = arith.constant 0 : i32
    %c0_i32_0 = arith.constant 0 : i32
    %c0_i32_1 = arith.constant 0 : i32
    return %arg0, %c0_i32, %c0_i32_0 : i32, i32, i32
  }
}

</mosaic_0001>

<llo_original>
// kernel: learner_forward.1
$region0: #{learner_forward.1}
  #allocation0 [shape = 'u32[]', space=smem, size = 0x4, offset = 0x4, fixed_abs, tag = 'smem constant byte address 0x4 - core index']
  #allocation1 [shape = 'u32[144,128]{1,0:T(1,128)}', space=vmem, size = 0x12000, scoped, tag = 'internal scratch']
  %s0 = inlined_call_operand.vmem [shape: f32[36,512], index: 0, kind: input, shape index: {}]
  %s1 = inlined_call_operand.vmem [shape: f32[8,36], index: 1, kind: input, shape index: {}]
  %s2 = inlined_call_operand.vmem [shape: f32[8,1], index: 2, kind: input, shape index: {}]
  %s3 = inlined_call_operand.vmem [shape: f32[8,256,32], index: 3, kind: input, shape index: {}]
  %s4 = inlined_call_operand.vmem [shape: f32[1,32], index: 4, kind: input, shape index: {}]
  %s5 = inlined_call_operand.vmem [shape: f32[32,10], index: 5, kind: input, shape index: {}]
  %s6 = inlined_call_operand.vmem [shape: f32[1,10], index: 6, kind: input, shape index: {}]
  %s7 = inlined_call_operand.hbm [shape: f32[2,1,10], index: 7, kind: output, shape index: {}]
  %s8 = sld [smem:[#allocation0]]
  $region84: #{learner_forward.1} parent=0
    _
  %s10 = ssub.s32 1, %s8
  %s11 = scalar_select 0, %s10, %s8
  $region1: #{learner_forward.1} parent=0
    #allocation2 [shape = 'u8[81920]{0}', space=vmem, size = 0x14000, scoped, tag = 'input window, operand 0']
    #allocation3 [shape = 'u8[1024]{0}', space=vmem, size = 0x400, scoped, tag = 'output window, operand 0']
    #allocation4 [shape = 's32[2]{0}', space=sflag, size = 0x8, scoped, tag = 'scoped memory for learner_forward.1']
    %12 = vsyncpa [#allocation4], 0
    %s13 = scalar_lea.sflag [#allocation4], 1
    %14 = vsyncpa %s13, 0
    loop: start=0, step=1, limit=4
    $region2: #{learner_forward.1} parent=1 // loop_pre_header
      _
    $region3: #{learner_forward.1} parent=1 // loop_header
      %s16 = sphi 0, %s20
      %p17 = scmp.ge.s32.totalorder %s16, 4
      %s26 = sphi 0, %s28
      %s29 = sphi 0, %s26
      %s30 = sphi 0, %s29
      %s46 = sphi 0, %s30
      %s50 = sphi 0, %s50
      %s52 = sphi 0, %s50
      %s53 = sphi 0, %s52
      %s67 = sphi 0, %s53
      %s71 = sphi 0, %s71
      %s73 = sphi 0, %s71
      %s74 = sphi 0, %s73
      %s88 = sphi 0, %s74
      %s92 = sphi 0, %s92
      %s94 = sphi 0, %s92
      %s95 = sphi 0, %s94
      %s109 = sphi 0, %s95
      %s113 = sphi 0, %s113
      %s115 = sphi 0, %s113
      %s116 = sphi 0, %s115
      %s130 = sphi 0, %s116
      %s134 = sphi 0, %s134
      %s136 = sphi 0, %s134
      %s137 = sphi 0, %s136
      %s151 = sphi 0, %s137
      %s155 = sphi 0, %s155
      %s157 = sphi 0, %s155
      %s158 = sphi 0, %s157
      %s172 = sphi 0, %s158
      %s178 = sphi 0, %s180
      %s181 = sphi 0, %s178
      %s182 = sphi 0, %s181
      %s198 = sphi 0, %s182
    $region4: #{learner_forward.1} parent=1 // loop_header_branch
      %19 = sbr.rel (%p17) target = $region8
    $region5: #{learner_forward.1} parent=1 // loop_body
      %s21 = ssub.s32 %s16, 1
      %s22 = ssub.s32 %s16, 2
      %s23 = sadd.s32 %s16, 1
      %s24 = ssub.s32 %s16, %s23
      %p25 = scmp.eq.s32.totalorder %s24, 0
      %s27 = sadd.s32 %s26, 1
      %s28 = scalar_select %p25, %s26, %s27
      %p31 = pneg %p25
      %p32 = scmp.eq.s32.totalorder %s16, 1
      %p33 = por %p31, %p32
      %p34 = scmp.ne.s32.totalorder %s26, %s29
      %p35 = scmp.eq.s32.totalorder %s16, 0
      %p36 = por %p34, %p35
      %p37 = scmp.ne.s32.totalorder %s26, %s29
      %p38 = scmp.eq.s32.totalorder %s21, 1
      %p39 = por %p37, %p38
      %p40 = scmp.ne.s32.totalorder %s29, %s30
      %p41 = scmp.eq.s32.totalorder %s21, 0
      %p42 = por %p40, %p41
      %p43 = scmp.ne.s32.totalorder %s29, %s30
      %p44 = scmp.eq.s32.totalorder %s22, 1
      %p45 = por %p43, %p44
      %p47 = scmp.ne.s32.totalorder %s30, %s46
      %p48 = scmp.eq.s32.totalorder %s22, 0
      %p49 = por %p47, %p48
      %s51 = sadd.s32 %s50, 1
      %p54 = scmp.eq.s32.totalorder %s16, 1
      %p55 = scmp.ne.s32.totalorder %s50, %s52
      %p56 = scmp.eq.s32.totalorder %s16, 0
      %p57 = por %p55, %p56
      %p58 = scmp.ne.s32.totalorder %s50, %s52
      %p59 = scmp.eq.s32.totalorder %s21, 1
      %p60 = por %p58, %p59
      %p61 = scmp.ne.s32.totalorder %s52, %s53
      %p62 = scmp.eq.s32.totalorder %s21, 0
      %p63 = por %p61, %p62
      %p64 = scmp.ne.s32.totalorder %s52, %s53
      %p65 = scmp.eq.s32.totalorder %s22, 1
      %p66 = por %p64, %p65
      %p68 = scmp.ne.s32.totalorder %s53, %s67
      %p69 = scmp.eq.s32.totalorder %s22, 0
      %p70 = por %p68, %p69
      %s72 = sadd.s32 %s71, 1
      %p75 = scmp.eq.s32.totalorder %s16, 1
      %p76 = scmp.ne.s32.totalorder %s71, %s73
      %p77 = scmp.eq.s32.totalorder %s16, 0
      %p78 = por %p76, %p77
      %p79 = scmp.ne.s32.totalorder %s71, %s73
      %p80 = scmp.eq.s32.totalorder %s21, 1
      %p81 = por %p79, %p80
      %p82 = scmp.ne.s32.totalorder %s73, %s74
      %p83 = scmp.eq.s32.totalorder %s21, 0
      %p84 = por %p82, %p83
      %p85 = scmp.ne.s32.totalorder %s73, %s74
      %p86 = scmp.eq.s32.totalorder %s22, 1
      %p87 = por %p85, %p86
      %p89 = scmp.ne.s32.totalorder %s74, %s88
      %p90 = scmp.eq.s32.totalorder %s22, 0
      %p91 = por %p89, %p90
      %s93 = sadd.s32 %s92, 1
      %p96 = scmp.eq.s32.totalorder %s16, 1
      %p97 = scmp.ne.s32.totalorder %s92, %s94
      %p98 = scmp.eq.s32.totalorder %s16, 0
      %p99 = por %p97, %p98
      %p100 = scmp.ne.s32.totalorder %s92, %s94
      %p101 = scmp.eq.s32.totalorder %s21, 1
      %p102 = por %p100, %p101
      %p103 = scmp.ne.s32.totalorder %s94, %s95
      %p104 = scmp.eq.s32.totalorder %s21, 0
      %p105 = por %p103, %p104
      %p106 = scmp.ne.s32.totalorder %s94, %s95
      %p107 = scmp.eq.s32.totalorder %s22, 1
      %p108 = por %p106, %p107
      %p110 = scmp.ne.s32.totalorder %s95, %s109
      %p111 = scmp.eq.s32.totalorder %s22, 0
      %p112 = por %p110, %p111
      %s114 = sadd.s32 %s113, 1
      %p117 = scmp.eq.s32.totalorder %s16, 1
      %p118 = scmp.ne.s32.totalorder %s113, %s115
      %p119 = scmp.eq.s32.totalorder %s16, 0
      %p120 = por %p118, %p119
      %p121 = scmp.ne.s32.totalorder %s113, %s115
      %p122 = scmp.eq.s32.totalorder %s21, 1
      %p123 = por %p121, %p122
      %p124 = scmp.ne.s32.totalorder %s115, %s116
      %p125 = scmp.eq.s32.totalorder %s21, 0
      %p126 = por %p124, %p125
      %p127 = scmp.ne.s32.totalorder %s115, %s116
      %p128 = scmp.eq.s32.totalorder %s22, 1
      %p129 = por %p127, %p128
      %p131 = scmp.ne.s32.totalorder %s116, %s130
      %p132 = scmp.eq.s32.totalorder %s22, 0
      %p133 = por %p131, %p132
      %s135 = sadd.s32 %s134, 1
      %p138 = scmp.eq.s32.totalorder %s16, 1
      %p139 = scmp.ne.s32.totalorder %s134, %s136
      %p140 = scmp.eq.s32.totalorder %s16, 0
      %p141 = por %p139, %p140
      %p142 = scmp.ne.s32.totalorder %s134, %s136
      %p143 = scmp.eq.s32.totalorder %s21, 1
      %p144 = por %p142, %p143
      %p145 = scmp.ne.s32.totalorder %s136, %s137
      %p146 = scmp.eq.s32.totalorder %s21, 0
      %p147 = por %p145, %p146
      %p148 = scmp.ne.s32.totalorder %s136, %s137
      %p149 = scmp.eq.s32.totalorder %s22, 1
      %p150 = por %p148, %p149
      %p152 = scmp.ne.s32.totalorder %s137, %s151
      %p153 = scmp.eq.s32.totalorder %s22, 0
      %p154 = por %p152, %p153
      %s156 = sadd.s32 %s155, 1
      %p159 = scmp.eq.s32.totalorder %s16, 1
      %p160 = scmp.ne.s32.totalorder %s155, %s157
      %p161 = scmp.eq.s32.totalorder %s16, 0
      %p162 = por %p160, %p161
      %p163 = scmp.ne.s32.totalorder %s155, %s157
      %p164 = scmp.eq.s32.totalorder %s21, 1
      %p165 = por %p163, %p164
      %p166 = scmp.ne.s32.totalorder %s157, %s158
      %p167 = scmp.eq.s32.totalorder %s21, 0
      %p168 = por %p166, %p167
      %p169 = scmp.ne.s32.totalorder %s157, %s158
      %p170 = scmp.eq.s32.totalorder %s22, 1
      %p171 = por %p169, %p170
      %p173 = scmp.ne.s32.totalorder %s158, %s172
      %p174 = scmp.eq.s32.totalorder %s22, 0
      %p175 = por %p173, %p174
      %s176 = ssub.s32 %s16, %s23
      %p177 = scmp.eq.s32.totalorder %s176, 0
      %s179 = sadd.s32 %s178, 1
      %s180 = scalar_select %p177, %s178, %s179
      %p183 = pneg %p177
      %p184 = scmp.eq.s32.totalorder %s16, 1
      %p185 = por %p183, %p184
      %p186 = scmp.ne.s32.totalorder %s178, %s181
      %p187 = scmp.eq.s32.totalorder %s16, 0
      %p188 = por %p186, %p187
      %p189 = scmp.ne.s32.totalorder %s178, %s181
      %p190 = scmp.eq.s32.totalorder %s21, 1
      %p191 = por %p189, %p190
      %p192 = scmp.ne.s32.totalorder %s181, %s182
      %p193 = scmp.eq.s32.totalorder %s21, 0
      %p194 = por %p192, %p193
      %p195 = scmp.ne.s32.totalorder %s181, %s182
      %p196 = scmp.eq.s32.totalorder %s22, 1
      %p197 = por %p195, %p196
      %p199 = scmp.ne.s32.totalorder %s182, %s198
      %p200 = scmp.eq.s32.totalorder %s22, 0
      %p201 = por %p199, %p200
      %p202 = scmp.le.s32.totalorder 1, %s16
      %p203 = scmp.lt.s32.totalorder %s16, 3
      %p204 = pnand %p202, %p203
      %p205 = pneg %p204
      // Predicated region
      $region9: #{learner_forward.1} parent=5 // pred_check
        _
      $region10: #{learner_forward.1} parent=5 // pred_check_branch
        %207 = sbr.rel (%p204) target = $region12
      $region11: #{learner_forward.1} parent=5 // pred_region
        %s208 = ssub.s32 %s16, 1
        // Predicated region
        $region13: #{learner_forward.1} parent=11 // pred_check
          %p209 = pneg %p63
        $region14: #{learner_forward.1} parent=11 // pred_check_branch
          %211 = sbr.rel (%p209) target = $region16
        $region15: #{learner_forward.1} parent=11 // pred_region
          _
        $region16: #{learner_forward.1} parent=11 // pred_fallthru
          _
        // Predicated region
        $region17: #{learner_forward.1} parent=11 // pred_check
          %p212 = pneg %p84
        $region18: #{learner_forward.1} parent=11 // pred_check_branch
          %214 = sbr.rel (%p212) target = $region20
        $region19: #{learner_forward.1} parent=11 // pred_region
          _
        $region20: #{learner_forward.1} parent=11 // pred_fallthru
          _
        // Predicated region
        $region21: #{learner_forward.1} parent=11 // pred_check
          %p215 = pneg %p105
        $region22: #{learner_forward.1} parent=11 // pred_check_branch
          %217 = sbr.rel (%p215) target = $region24
        $region23: #{learner_forward.1} parent=11 // pred_region
          _
        $region24: #{learner_forward.1} parent=11 // pred_fallthru
          _
        // Predicated region
        $region25: #{learner_forward.1} parent=11 // pred_check
          %p218 = pneg %p126
        $region26: #{learner_forward.1} parent=11 // pred_check_branch
          %220 = sbr.rel (%p218) target = $region28
        $region27: #{learner_forward.1} parent=11 // pred_region
          _
        $region28: #{learner_forward.1} parent=11 // pred_fallthru
          _
        // Predicated region
        $region29: #{learner_forward.1} parent=11 // pred_check
          %p221 = pneg %p147
        $region30: #{learner_forward.1} parent=11 // pred_check_branch
          %223 = sbr.rel (%p221) target = $region32
        $region31: #{learner_forward.1} parent=11 // pred_region
          _
        $region32: #{learner_forward.1} parent=11 // pred_fallthru
          _
        // Predicated region
        $region33: #{learner_forward.1} parent=11 // pred_check
          %p224 = pneg %p168
        $region34: #{learner_forward.1} parent=11 // pred_check_branch
          %226 = sbr.rel (%p224) target = $region36
        $region35: #{learner_forward.1} parent=11 // pred_region
          _
        $region36: #{learner_forward.1} parent=11 // pred_fallthru
          _
      $region12: #{learner_forward.1} parent=5 // pred_fallthru
        _
      %p227 = scmp.lt.s32.totalorder %s16, 2
      // Predicated region
      $region37: #{learner_forward.1} parent=5 // pred_check
        %p228 = pneg %p227
      $region38: #{learner_forward.1} parent=5 // pred_check_branch
        %230 = sbr.rel (%p228) target = $region40
      $region39: #{learner_forward.1} parent=5 // pred_region
        // Predicated region
        $region41: #{learner_forward.1} parent=39 // pred_check
          %p231 = pneg %p36
        $region42: #{learner_forward.1} parent=39 // pred_check_branch
          %233 = sbr.rel (%p231) target = $region44
        $region43: #{learner_forward.1} parent=39 // pred_region
          %s234 = sand.u32 %s26, 1
          %s235 = sand.u32 %s26, 1
          %s236 = smul.addr %s235, 80
          %s237 = scalar_lea.vmem [#allocation2], %s236
          %s238 = smul.u32 2, %s16
          %s239 = smul.addr %s238, 8
          %s240 = scalar_lea.vmem %s0, %s239
          // Predicated region
          $region45: #{learner_forward.1} parent=43 // pred_check
            _
          $region46: #{learner_forward.1} parent=43 // pred_check_branch
            %242 = sbr.rel (0) target = $region48
          $region47: #{learner_forward.1} parent=43 // pred_region
            // Predicated region
            $region49: #{learner_forward.1} parent=47 // pred_check
              _
            $region50: #{learner_forward.1} parent=47 // pred_check_branch
              %244 = sbr.rel (0) target = $region52
            $region51: #{learner_forward.1} parent=47 // pred_region
              loop: start=0, step=1, limit=1
              $region53: #{learner_forward.1} parent=51 // loop_pre_header
                _
              $region54: #{learner_forward.1} parent=51 // loop_header
                %s246 = sphi 0, %s250
                %p247 = scmp.ge.s32.totalorder %s246, 1
                %s251 = sphi %s240, %s240
                %s252 = sphi %s237, %s237
              $region55: #{learner_forward.1} parent=51 // loop_header_branch
                %249 = sbr.rel (%p247) target = $region59
              $region56: #{learner_forward.1} parent=51 // loop_body
                %v253 = vld [vmem:[%s251] sm:$0xff]
                %254 = vst [vmem:[%s252] sm:$0xff] %v253
                %v255 = vld [vmem:[%s251 + $0x8] sm:$0xff]
                %256 = vst [vmem:[%s252 + $0x8] sm:$0xff] %v255
                %v257 = vld [vmem:[%s251 + $0x20] sm:$0xff]
                %258 = vst [vmem:[%s252 + $0x10] sm:$0xff] %v257
                %v259 = vld [vmem:[%s251 + $0x28] sm:$0xff]
                %260 = vst [vmem:[%s252 + $0x18] sm:$0xff] %v259
                %v261 = vld [vmem:[%s251 + $0x40] sm:$0xff]
                %262 = vst [vmem:[%s252 + $0x20] sm:$0xff] %v261
                %v263 = vld [vmem:[%s251 + $0x48] sm:$0xff]
                %264 = vst [vmem:[%s252 + $0x28] sm:$0xff] %v263
                %v265 = vld [vmem:[%s251 + $0x60] sm:$0xff]
                %266 = vst [vmem:[%s252 + $0x30] sm:$0xff] %v265
                %v267 = vld [vmem:[%s251 + $0x68] sm:$0xff]
                %268 = vst [vmem:[%s252 + $0x38] sm:$0xff] %v267
                %v269 = vld [vmem:[%s251 + $0x80] sm:$0xff]
                %270 = vst [vmem:[%s252 + $0x40] sm:$0xff] %v269
                %v271 = vld [vmem:[%s251 + $0x88] sm:$0xff]
                %272 = vst [vmem:[%s252 + $0x48] sm:$0xff] %v271
              $region57: #{learner_forward.1} parent=51 // loop_footer
                %s250 = sadd.s32 1, %s246
              $region58: #{learner_forward.1} parent=51 // loop_footer_branch
                %245 = sbr.rel target = $region54
              $region59: #{learner_forward.1} parent=51 // loop_exit
                _
            $region52: #{learner_forward.1} parent=47 // pred_fallthru
              _
            // Predicated region
            $region60: #{learner_forward.1} parent=47 // pred_check
              _
            $region61: #{learner_forward.1} parent=47 // pred_check_branch
              %274 = sbr.rel target = $region63
            $region62: #{learner_forward.1} parent=47 // pred_region
              _
            $region63: #{learner_forward.1} parent=47 // pred_fallthru
              _
          $region48: #{learner_forward.1} parent=43 // pred_fallthru
            _
          %275 = vnop
        $region44: #{learner_forward.1} parent=39 // pred_fallthru
          _
      $region40: #{learner_forward.1} parent=5 // pred_fallthru
        _
      %p276 = scmp.le.s32.totalorder 1, %s16
      %p277 = scmp.lt.s32.totalorder %s16, 3
      %p278 = pnand %p276, %p277
      %p279 = pneg %p278
      // Predicated region
      $region64: #{learner_forward.1} parent=5 // pred_check
        _
      $region65: #{learner_forward.1} parent=5 // pred_check_branch
        %281 = sbr.rel (%p278) target = $region67
      $region66: #{learner_forward.1} parent=5 // pred_region
        %s282 = ssub.s32 %s16, 1
        %s283 = sand.u32 %s29, 1
        %s284 = sand.u32 %s29, 1
        %s285 = smul.addr %s284, 80
        %s286 = scalar_lea.vmem [#allocation2], %s285
        // Predicated region
        $region68: #{learner_forward.1} parent=66 // pred_check
          %p287 = pneg %p42
        $region69: #{learner_forward.1} parent=66 // pred_check_branch
          %289 = sbr.rel (%p287) target = $region71
        $region70: #{learner_forward.1} parent=66 // pred_region
          _
        $region71: #{learner_forward.1} parent=66 // pred_fallthru
          _
        %s290 = sand.u32 %s29, 1
        %s291 = sand.u32 %s29, 1
        %s292 = smul.addr %s291, 80
        %s293 = scalar_lea.vmem [#allocation2], %s292
        %p294 = pneg %p42
        %p295 = pneg %p39
        %p296 = pneg %p63
        %p297 = pneg %p60
        %p298 = pneg %p84
        %p299 = pneg %p81
        %p300 = pneg %p105
        %p301 = pneg %p102
        %p302 = pneg %p126
        %p303 = pneg %p123
        %p304 = pneg %p147
        %p305 = pneg %p144
        %p306 = pneg %p168
        %p307 = pneg %p165
        %p308 = pneg %p194
        %p309 = pneg %p191
        %s310 = sand.u32 %s181, 1
        %s311 = scalar_lea.sflag [#allocation4], %s310
        %s312 = sand.u32 %s181, 1
        %s313 = scalar_lea.vmem [#allocation3], %s312
        %s314 = smul.u32 2, %s21
        %v315 = vld [vmem:[%s1] sm:$0xff]
        %v316 = vld [vmem:[%s286] sm:$0xff]
        %v317 = vld [vmem:[%s286 + $0x8] sm:$0xff]
        %v318 = vld [vmem:[%s286 + $0x10] sm:$0xff]
        %v319 = vld [vmem:[%s286 + $0x18] sm:$0xff]
        %v320 = vld [vmem:[%s286 + $0x20] sm:$0xff]
        %v321 = vld [vmem:[%s286 + $0x28] sm:$0xff]
        %v322 = vld [vmem:[%s286 + $0x30] sm:$0xff]
        %v323 = vld [vmem:[%s286 + $0x38] sm:$0xff]
        %v324 = vld [vmem:[%s286 + $0x40] sm:$0xf]
        %v325 = vld [vmem:[%s286 + $0x48] sm:$0xf]
        %v326 = vld [vmem:[%s2] sm:$0xff]
        %328 = vset.pattern.permute.xlu0 0
        %329 = vperm.xlu0 %328, %v326
        %v330 = vpop.permute.xlu0 %329
        %vm332 = vcmask 293888
        %v334 = vsel %vm332, %v315, 0
        %vm336 = vcmask 1043456
        %v338 = vsel %vm336, %v324, 0
        %v341 = vsel %vm336, %v325, 0
        %343 = vmatprep.subr.mxu0 %v317
        %344 = vmatpush1.msra.mxu0 %v316
        %345 = vmatprep.subr.mxu0 %v319
        %346 = vmatpush1.msra.mxu0 %v318
        %347 = vmatprep.subr.mxu0 %v321
        %348 = vmatpush1.msra.mxu0 %v320
        %349 = vmatprep.subr.mxu0 %v323
        %350 = vmatpush1.msra.mxu0 %v322
        %351 = vmatprep.subr.mxu0 %v341
        %352 = vmatpush1.msra.mxu0 %v338
        %353 = vmatprep.subr.mxu0 0.0
        %354 = vmatpush1.msra.mxu0 0.0
        %355 = vmatprep.subr.mxu0 0.0
        %356 = vmatpush1.msra.mxu0 0.0
        %357 = vmatprep.subr.mxu0 0.0
        %358 = vmatpush1.msra.mxu0 0.0
        %359 = vmatprep.subr.mxu0 0.0
        %360 = vmatpush1.msra.mxu0 0.0
        %361 = vmatprep.subr.mxu0 0.0
        %362 = vmatpush1.msra.mxu0 0.0
        %363 = vmatprep.subr.mxu0 0.0
        %364 = vmatpush1.msra.mxu0 0.0
        %365 = vmatprep.subr.mxu0 0.0
        %366 = vmatpush1.msra.mxu0 0.0
        %367 = vmatprep.subr.mxu0 0.0
        %368 = vmatpush1.msra.mxu0 0.0
        %369 = vmatprep.subr.mxu0 0.0
        %370 = vmatpush1.msra.mxu0 0.0
        %371 = vmatprep.subr.mxu0 0.0
        %372 = vmatpush1.msra.mxu0 0.0
        %373 = vmatprep.subr.mxu0 0.0
        %374 = vmatpush1.msra.mxu0 0.0
        %375 = vmatprep.subr.mxu0 0.0
        %376 = vmatpush1.msra.mxu0 0.0
        %377 = vmatprep.subr.mxu0 0.0
        %378 = vmatpush1.msra.mxu0 0.0
        %379 = vmatprep.subr.mxu0 0.0
        %380 = vmatpush1.msra.mxu0 0.0
        %381 = vmatprep.subr.mxu0 0.0
        %382 = vmatpush1.msra.mxu0 0.0
        %383 = vmatprep.subr.mxu0 0.0
        %384 = vmatpush1.msra.mxu0 0.0
        %385 = vmatprep.subr.mxu0 0.0
        %386 = vmatpush1.msra.mxu0 0.0
        %387 = vmatprep.subr.mxu0 0.0
        %388 = vmatpush1.msra.mxu0 0.0
        %389 = vmatprep.subr.mxu0 0.0
        %390 = vmatpush1.msra.mxu0 0.0
        %391 = vmatprep.subr.mxu0 0.0
        %392 = vmatpush1.msra.mxu0 0.0
        %393 = vmatprep.subr.mxu0 0.0
        %394 = vmatpush1.msra.mxu0 0.0
        %395 = vmatprep.subr.mxu0 0.0
        %396 = vmatpush1.msra.mxu0 0.0
        %397 = vmatprep.subr.mxu0 0.0
        %398 = vmatpush1.msra.mxu0 0.0
        %399 = vmatprep.subr.mxu0 0.0
        %400 = vmatpush1.msra.mxu0 0.0
        %401 = vmatprep.subr.mxu0 0.0
        %402 = vmatpush1.msra.mxu0 0.0
        %403 = vmatprep.subr.mxu0 0.0
        %404 = vmatpush1.msra.mxu0 0.0
        %405 = vmatprep.subr.mxu0 0.0
        %406 = vmatpush1.msra.mxu0 0.0
        %407 = vmatprep.mubr.f32.mxu0 0.0
        %408 = vmatmul.mubr.f32.gmra.mrb[0].mxu0 %v334
        %v409 = vpop.f32.mrb[0].mxu0
        %v410 = vadd.f32 %v330, %v409
        %v411 = vpop.f32.mrb[0].mxu0
        %v412 = vadd.f32 %v330, %v411
        %413 = vdwg.mxu0
        %v414 = vmax.f32 %v410, 0.0
        %v415 = vmax.f32 %v412, 0.0
        %v416 = vld [vmem:[%s4] sm:$0x1]
        %v417 = vld [vmem:[%s3] sm:$0xff]
        %v418 = vld [vmem:[%s3 + $0x8] sm:$0xff]
        %v419 = vld [vmem:[%s3 + $0x10] sm:$0xff]
        %v420 = vld [vmem:[%s3 + $0x18] sm:$0xff]
        %v421 = vld [vmem:[%s3 + $0x20] sm:$0xff]
        %v422 = vld [vmem:[%s3 + $0x28] sm:$0xff]
        %v423 = vld [vmem:[%s3 + $0x30] sm:$0xff]
        %v424 = vld [vmem:[%s3 + $0x38] sm:$0xff]
        %v425 = vld [vmem:[%s3 + $0x40] sm:$0xff]
        %v426 = vld [vmem:[%s3 + $0x48] sm:$0xff]
        %v427 = vld [vmem:[%s3 + $0x50] sm:$0xff]
        %v428 = vld [vmem:[%s3 + $0x58] sm:$0xff]
        %v429 = vld [vmem:[%s3 + $0x60] sm:$0xff]
        %v430 = vld [vmem:[%s3 + $0x68] sm:$0xff]
        %v431 = vld [vmem:[%s3 + $0x70] sm:$0xff]
        %v432 = vld [vmem:[%s3 + $0x78] sm:$0xff]
        %v433 = vld [vmem:[%s3 + $0x80] sm:$0xff]
        %v434 = vld [vmem:[%s3 + $0x88] sm:$0xff]
        %v435 = vld [vmem:[%s3 + $0x90] sm:$0xff]
        %v436 = vld [vmem:[%s3 + $0x98] sm:$0xff]
        %v437 = vld [vmem:[%s3 + $0xa0] sm:$0xff]
        %v438 = vld [vmem:[%s3 + $0xa8] sm:$0xff]
        %v439 = vld [vmem:[%s3 + $0xb0] sm:$0xff]
        %v440 = vld [vmem:[%s3 + $0xb8] sm:$0xff]
        %v441 = vld [vmem:[%s3 + $0xc0] sm:$0xff]
        %v442 = vld [vmem:[%s3 + $0xc8] sm:$0xff]
        %v443 = vld [vmem:[%s3 + $0xd0] sm:$0xff]
        %v444 = vld [vmem:[%s3 + $0xd8] sm:$0xff]
        %v445 = vld [vmem:[%s3 + $0xe0] sm:$0xff]
        %v446 = vld [vmem:[%s3 + $0xe8] sm:$0xff]
        %v447 = vld [vmem:[%s3 + $0xf0] sm:$0xff]
        %v448 = vld [vmem:[%s3 + $0xf8] sm:$0xff]
        %449 = vmatprep.subr.mxu0 0.0
        %450 = vmatpush1.msra.mxu0 %v417
        %451 = vmatprep.subr.mxu0 0.0
        %452 = vmatpush1.msra.mxu0 %v418
        %453 = vmatprep.subr.mxu0 0.0
        %454 = vmatpush1.msra.mxu0 %v419
        %455 = vmatprep.subr.mxu0 0.0
        %456 = vmatpush1.msra.mxu0 %v420
        %457 = vmatprep.subr.mxu0 0.0
        %458 = vmatpush1.msra.mxu0 %v421
        %459 = vmatprep.subr.mxu0 0.0
        %460 = vmatpush1.msra.mxu0 %v422
        %461 = vmatprep.subr.mxu0 0.0
        %462 = vmatpush1.msra.mxu0 %v423
        %463 = vmatprep.subr.mxu0 0.0
        %464 = vmatpush1.msra.mxu0 %v424
        %465 = vmatprep.subr.mxu0 0.0
        %466 = vmatpush1.msra.mxu0 %v425
        %467 = vmatprep.subr.mxu0 0.0
        %468 = vmatpush1.msra.mxu0 %v426
        %469 = vmatprep.subr.mxu0 0.0
        %470 = vmatpush1.msra.mxu0 %v427
        %471 = vmatprep.subr.mxu0 0.0
        %472 = vmatpush1.msra.mxu0 %v428
        %473 = vmatprep.subr.mxu0 0.0
        %474 = vmatpush1.msra.mxu0 %v429
        %475 = vmatprep.subr.mxu0 0.0
        %476 = vmatpush1.msra.mxu0 %v430
        %477 = vmatprep.subr.mxu0 0.0
        %478 = vmatpush1.msra.mxu0 %v431
        %479 = vmatprep.subr.mxu0 0.0
        %480 = vmatpush1.msra.mxu0 %v432
        %481 = vmatprep.subr.mxu0 0.0
        %482 = vmatpush1.msra.mxu0 %v433
        %483 = vmatprep.subr.mxu0 0.0
        %484 = vmatpush1.msra.mxu0 %v434
        %485 = vmatprep.subr.mxu0 0.0
        %486 = vmatpush1.msra.mxu0 %v435
        %487 = vmatprep.subr.mxu0 0.0
        %488 = vmatpush1.msra.mxu0 %v436
        %489 = vmatprep.subr.mxu0 0.0
        %490 = vmatpush1.msra.mxu0 %v437
        %491 = vmatprep.subr.mxu0 0.0
        %492 = vmatpush1.msra.mxu0 %v438
        %493 = vmatprep.subr.mxu0 0.0
        %494 = vmatpush1.msra.mxu0 %v439
        %495 = vmatprep.subr.mxu0 0.0
        %496 = vmatpush1.msra.mxu0 %v440
        %497 = vmatprep.subr.mxu0 0.0
        %498 = vmatpush1.msra.mxu0 %v441
        %499 = vmatprep.subr.mxu0 0.0
        %500 = vmatpush1.msra.mxu0 %v442
        %501 = vmatprep.subr.mxu0 0.0
        %502 = vmatpush1.msra.mxu0 %v443
        %503 = vmatprep.subr.mxu0 0.0
        %504 = vmatpush1.msra.mxu0 %v444
        %505 = vmatprep.subr.mxu0 0.0
        %506 = vmatpush1.msra.mxu0 %v445
        %507 = vmatprep.subr.mxu0 0.0
        %508 = vmatpush1.msra.mxu0 %v446
        %509 = vmatprep.subr.mxu0 0.0
        %510 = vmatpush1.msra.mxu0 %v447
        %511 = vmatprep.subr.mxu0 0.0
        %512 = vmatpush1.msra.mxu0 %v448
        %513 = vmatprep.mubr.f32.mxu0 %v415
        %514 = vmatmul.mubr.f32.gmra.mrb[0].mxu0 %v414
        %v515 = vpop.f32.mrb[0].mxu0
        %v516 = vadd.f32 0.0, %v515
        %v517 = vpop.f32.mrb[0].mxu0
        %518 = vdwg.mxu0
        %v519 = vadd.f32 %v416, %v516
        %s520 = scalar_lea.vmem %s3, 256
        %v521 = vld [vmem:[%s520] sm:$0xff]
        %v522 = vld [vmem:[%s520 + $0x8] sm:$0xff]
        %v523 = vld [vmem:[%s520 + $0x10] sm:$0xff]
        %v524 = vld [vmem:[%s520 + $0x18] sm:$0xff]
        %v525 = vld [vmem:[%s520 + $0x20] sm:$0xff]
        %v526 = vld [vmem:[%s520 + $0x28] sm:$0xff]
        %v527 = vld [vmem:[%s520 + $0x30] sm:$0xff]
        %v528 = vld [vmem:[%s520 + $0x38] sm:$0xff]
        %v529 = vld [vmem:[%s520 + $0x40] sm:$0xff]
        %v530 = vld [vmem:[%s520 + $0x48] sm:$0xff]
        %v531 = vld [vmem:[%s520 + $0x50] sm:$0xff]
        %v532 = vld [vmem:[%s520 + $0x58] sm:$0xff]
        %v533 = vld [vmem:[%s520 + $0x60] sm:$0xff]
        %v534 = vld [vmem:[%s520 + $0x68] sm:$0xff]
        %v535 = vld [vmem:[%s520 + $0x70] sm:$0xff]
        %v536 = vld [vmem:[%s520 + $0x78] sm:$0xff]
        %v537 = vld [vmem:[%s520 + $0x80] sm:$0xff]
        %v538 = vld [vmem:[%s520 + $0x88] sm:$0xff]
        %v539 = vld [vmem:[%s520 + $0x90] sm:$0xff]
        %v540 = vld [vmem:[%s520 + $0x98] sm:$0xff]
        %v541 = vld [vmem:[%s520 + $0xa0] sm:$0xff]
        %v542 = vld [vmem:[%s520 + $0xa8] sm:$0xff]
        %v543 = vld [vmem:[%s520 + $0xb0] sm:$0xff]
        %v544 = vld [vmem:[%s520 + $0xb8] sm:$0xff]
        %v545 = vld [vmem:[%s520 + $0xc0] sm:$0xff]
        %v546 = vld [vmem:[%s520 + $0xc8] sm:$0xff]
        %v547 = vld [vmem:[%s520 + $0xd0] sm:$0xff]
        %v548 = vld [vmem:[%s520 + $0xd8] sm:$0xff]
        %v549 = vld [vmem:[%s520 + $0xe0] sm:$0xff]
        %v550 = vld [vmem:[%s520 + $0xe8] sm:$0xff]
        %v551 = vld [vmem:[%s520 + $0xf0] sm:$0xff]
        %v552 = vld [vmem:[%s520 + $0xf8] sm:$0xff]
        %553 = vmatprep.subr.mxu0 0.0
        %554 = vmatpush1.msra.mxu0 %v521
        %555 = vmatprep.subr.mxu0 0.0
        %556 = vmatpush1.msra.mxu0 %v522
        %557 = vmatprep.subr.mxu0 0.0
        %558 = vmatpush1.msra.mxu0 %v523
        %559 = vmatprep.subr.mxu0 0.0
        %560 = vmatpush1.msra.mxu0 %v524
        %561 = vmatprep.subr.mxu0 0.0
        %562 = vmatpush1.msra.mxu0 %v525
        %563 = vmatprep.subr.mxu0 0.0
        %564 = vmatpush1.msra.mxu0 %v526
        %565 = vmatprep.subr.mxu0 0.0
        %566 = vmatpush1.msra.mxu0 %v527
        %567 = vmatprep.subr.mxu0 0.0
        %568 = vmatpush1.msra.mxu0 %v528
        %569 = vmatprep.subr.mxu0 0.0
        %570 = vmatpush1.msra.mxu0 %v529
        %571 = vmatprep.subr.mxu0 0.0
        %572 = vmatpush1.msra.mxu0 %v530
        %573 = vmatprep.subr.mxu0 0.0
        %574 = vmatpush1.msra.mxu0 %v531
        %575 = vmatprep.subr.mxu0 0.0
        %576 = vmatpush1.msra.mxu0 %v532
        %577 = vmatprep.subr.mxu0 0.0
        %578 = vmatpush1.msra.mxu0 %v533
        %579 = vmatprep.subr.mxu0 0.0
        %580 = vmatpush1.msra.mxu0 %v534
        %581 = vmatprep.subr.mxu0 0.0
        %582 = vmatpush1.msra.mxu0 %v535
        %583 = vmatprep.subr.mxu0 0.0
        %584 = vmatpush1.msra.mxu0 %v536
        %585 = vmatprep.subr.mxu0 0.0
        %586 = vmatpush1.msra.mxu0 %v537
        %587 = vmatprep.subr.mxu0 0.0
        %588 = vmatpush1.msra.mxu0 %v538
        %589 = vmatprep.subr.mxu0 0.0
        %590 = vmatpush1.msra.mxu0 %v539
        %591 = vmatprep.subr.mxu0 0.0
        %592 = vmatpush1.msra.mxu0 %v540
        %593 = vmatprep.subr.mxu0 0.0
        %594 = vmatpush1.msra.mxu0 %v541
        %595 = vmatprep.subr.mxu0 0.0
        %596 = vmatpush1.msra.mxu0 %v542
        %597 = vmatprep.subr.mxu0 0.0
        %598 = vmatpush1.msra.mxu0 %v543
        %599 = vmatprep.subr.mxu0 0.0
        %600 = vmatpush1.msra.mxu0 %v544
        %601 = vmatprep.subr.mxu0 0.0
        %602 = vmatpush1.msra.mxu0 %v545
        %603 = vmatprep.subr.mxu0 0.0
        %604 = vmatpush1.msra.mxu0 %v546
        %605 = vmatprep.subr.mxu0 0.0
        %606 = vmatpush1.msra.mxu0 %v547
        %607 = vmatprep.subr.mxu0 0.0
        %608 = vmatpush1.msra.mxu0 %v548
        %609 = vmatprep.subr.mxu0 0.0
        %610 = vmatpush1.msra.mxu0 %v549
        %611 = vmatprep.subr.mxu0 0.0
        %612 = vmatpush1.msra.mxu0 %v550
        %613 = vmatprep.subr.mxu0 0.0
        %614 = vmatpush1.msra.mxu0 %v551
        %615 = vmatprep.subr.mxu0 0.0
        %616 = vmatpush1.msra.mxu0 %v552
        %617 = vmatprep.mubr.f32.mxu0 %v415
        %618 = vmatmul.mubr.f32.gmra.mrb[0].mxu0 %v414
        %v619 = vpop.f32.mrb[0].mxu0
        %v620 = vadd.f32 0.0, %v619
        %v621 = vpop.f32.mrb[0].mxu0
        %622 = vdwg.mxu0
        %v625 = vunpack.c.l.s4 1966171168
        %v626 = vunpack.c.0.s8 %v625
        %v627 = vlaneseq
        %v628 = vshrl.u32 %v627, 7
        %v629 = vsub.s32 %v626, %v628
        %v630 = vrot.slane %v620, %v629
        %v631 = vcombine.high %v630, %v630
        %v633 = vunpack.c.l.s4 1966171168
        %v634 = vunpack.c.0.s8 %v633
        %v635 = vlaneseq
        %v636 = vshrl.u32 %v635, 7
        %v637 = vsub.s32 %v634, %v636
        %v638 = vrot.slane %v631, %v637
        %v640 = vadd.f32 %v519, %v638
        %s641 = scalar_lea.vmem %s3, 512
        %v642 = vld [vmem:[%s641] sm:$0xff]
        %v643 = vld [vmem:[%s641 + $0x8] sm:$0xff]
        %v644 = vld [vmem:[%s641 + $0x10] sm:$0xff]
        %v645 = vld [vmem:[%s641 + $0x18] sm:$0xff]
        %v646 = vld [vmem:[%s641 + $0x20] sm:$0xff]
        %v647 = vld [vmem:[%s641 + $0x28] sm:$0xff]
        %v648 = vld [vmem:[%s641 + $0x30] sm:$0xff]
        %v649 = vld [vmem:[%s641 + $0x38] sm:$0xff]
        %v650 = vld [vmem:[%s641 + $0x40] sm:$0xff]
        %v651 = vld [vmem:[%s641 + $0x48] sm:$0xff]
        %v652 = vld [vmem:[%s641 + $0x50] sm:$0xff]
        %v653 = vld [vmem:[%s641 + $0x58] sm:$0xff]
        %v654 = vld [vmem:[%s641 + $0x60] sm:$0xff]
        %v655 = vld [vmem:[%s641 + $0x68] sm:$0xff]
        %v656 = vld [vmem:[%s641 + $0x70] sm:$0xff]
        %v657 = vld [vmem:[%s641 + $0x78] sm:$0xff]
        %v658 = vld [vmem:[%s641 + $0x80] sm:$0xff]
        %v659 = vld [vmem:[%s641 + $0x88] sm:$0xff]
        %v660 = vld [vmem:[%s641 + $0x90] sm:$0xff]
        %v661 = vld [vmem:[%s641 + $0x98] sm:$0xff]
        %v662 = vld [vmem:[%s641 + $0xa0] sm:$0xff]
        %v663 = vld [vmem:[%s641 + $0xa8] sm:$0xff]
        %v664 = vld [vmem:[%s641 + $0xb0] sm:$0xff]
        %v665 = vld [vmem:[%s641 + $0xb8] sm:$0xff]
        %v666 = vld [vmem:[%s641 + $0xc0] sm:$0xff]
        %v667 = vld [vmem:[%s641 + $0xc8] sm:$0xff]
        %v668 = vld [vmem:[%s641 + $0xd0] sm:$0xff]
        %v669 = vld [vmem:[%s641 + $0xd8] sm:$0xff]
        %v670 = vld [vmem:[%s641 + $0xe0] sm:$0xff]
        %v671 = vld [vmem:[%s641 + $0xe8] sm:$0xff]
        %v672 = vld [vmem:[%s641 + $0xf0] sm:$0xff]
        %v673 = vld [vmem:[%s641 + $0xf8] sm:$0xff]
        %674 = vmatprep.subr.mxu0 0.0
        %675 = vmatpush1.msra.mxu0 %v642
        %676 = vmatprep.subr.mxu0 0.0
        %677 = vmatpush1.msra.mxu0 %v643
        %678 = vmatprep.subr.mxu0 0.0
        %679 = vmatpush1.msra.mxu0 %v644
        %680 = vmatprep.subr.mxu0 0.0
        %681 = vmatpush1.msra.mxu0 %v645
        %682 = vmatprep.subr.mxu0 0.0
        %683 = vmatpush1.msra.mxu0 %v646
        %684 = vmatprep.subr.mxu0 0.0
        %685 = vmatpush1.msra.mxu0 %v647
        %686 = vmatprep.subr.mxu0 0.0
        %687 = vmatpush1.msra.mxu0 %v648
        %688 = vmatprep.subr.mxu0 0.0
        %689 = vmatpush1.msra.mxu0 %v649
        %690 = vmatprep.subr.mxu0 0.0
        %691 = vmatpush1.msra.mxu0 %v650
        %692 = vmatprep.subr.mxu0 0.0
        %693 = vmatpush1.msra.mxu0 %v651
        %694 = vmatprep.subr.mxu0 0.0
        %695 = vmatpush1.msra.mxu0 %v652
        %696 = vmatprep.subr.mxu0 0.0
        %697 = vmatpush1.msra.mxu0 %v653
        %698 = vmatprep.subr.mxu0 0.0
        %699 = vmatpush1.msra.mxu0 %v654
        %700 = vmatprep.subr.mxu0 0.0
        %701 = vmatpush1.msra.mxu0 %v655
        %702 = vmatprep.subr.mxu0 0.0
        %703 = vmatpush1.msra.mxu0 %v656
        %704 = vmatprep.subr.mxu0 0.0
        %705 = vmatpush1.msra.mxu0 %v657
        %706 = vmatprep.subr.mxu0 0.0
        %707 = vmatpush1.msra.mxu0 %v658
        %708 = vmatprep.subr.mxu0 0.0
        %709 = vmatpush1.msra.mxu0 %v659
        %710 = vmatprep.subr.mxu0 0.0
        %711 = vmatpush1.msra.mxu0 %v660
        %712 = vmatprep.subr.mxu0 0.0
        %713 = vmatpush1.msra.mxu0 %v661
        %714 = vmatprep.subr.mxu0 0.0
        %715 = vmatpush1.msra.mxu0 %v662
        %716 = vmatprep.subr.mxu0 0.0
        %717 = vmatpush1.msra.mxu0 %v663
        %718 = vmatprep.subr.mxu0 0.0
        %719 = vmatpush1.msra.mxu0 %v664
        %720 = vmatprep.subr.mxu0 0.0
        %721 = vmatpush1.msra.mxu0 %v665
        %722 = vmatprep.subr.mxu0 0.0
        %723 = vmatpush1.msra.mxu0 %v666
        %724 = vmatprep.subr.mxu0 0.0
        %725 = vmatpush1.msra.mxu0 %v667
        %726 = vmatprep.subr.mxu0 0.0
        %727 = vmatpush1.msra.mxu0 %v668
        %728 = vmatprep.subr.mxu0 0.0
        %729 = vmatpush1.msra.mxu0 %v669
        %730 = vmatprep.subr.mxu0 0.0
        %731 = vmatpush1.msra.mxu0 %v670
        %732 = vmatprep.subr.mxu0 0.0
        %733 = vmatpush1.msra.mxu0 %v671
        %734 = vmatprep.subr.mxu0 0.0
        %735 = vmatpush1.msra.mxu0 %v672
        %736 = vmatprep.subr.mxu0 0.0
        %737 = vmatpush1.msra.mxu0 %v673
        %738 = vmatprep.mubr.f32.mxu0 %v415
        %739 = vmatmul.mubr.f32.gmra.mrb[0].mxu0 %v414
        %v740 = vpop.f32.mrb[0].mxu0
        %v741 = vadd.f32 0.0, %v740
        %v742 = vpop.f32.mrb[0].mxu0
        %743 = vdwg.mxu0
        %v746 = vunpack.c.l.s4 1966171168
        %v747 = vunpack.c.0.s8 %v746
        %v748 = vlaneseq
        %v749 = vshrl.u32 %v748, 7
        %v750 = vsub.s32 %v747, %v749
        %v751 = vrot.slane %v741, %v750
        %v753 = vunpack.c.l.s4 1966171168
        %v754 = vunpack.c.0.s8 %v753
        %v755 = vlaneseq
        %v756 = vshrl.u32 %v755, 7
        %v757 = vsub.s32 %v754, %v756
        %v758 = vrot.slane %v751, %v757
        %v759 = vcombine.high %v758, %v758
        %v761 = vadd.f32 %v640, %v759
        %s762 = scalar_lea.vmem %s3, 768
        %v763 = vld [vmem:[%s762] sm:$0xff]
        %v764 = vld [vmem:[%s762 + $0x8] sm:$0xff]
        %v765 = vld [vmem:[%s762 + $0x10] sm:$0xff]
        %v766 = vld [vmem:[%s762 + $0x18] sm:$0xff]
        %v767 = vld [vmem:[%s762 + $0x20] sm:$0xff]
        %v768 = vld [vmem:[%s762 + $0x28] sm:$0xff]
        %v769 = vld [vmem:[%s762 + $0x30] sm:$0xff]
        %v770 = vld [vmem:[%s762 + $0x38] sm:$0xff]
        %v771 = vld [vmem:[%s762 + $0x40] sm:$0xff]
        %v772 = vld [vmem:[%s762 + $0x48] sm:$0xff]
        %v773 = vld [vmem:[%s762 + $0x50] sm:$0xff]
        %v774 = vld [vmem:[%s762 + $0x58] sm:$0xff]
        %v775 = vld [vmem:[%s762 + $0x60] sm:$0xff]
        %v776 = vld [vmem:[%s762 + $0x68] sm:$0xff]
        %v777 = vld [vmem:[%s762 + $0x70] sm:$0xff]
        %v778 = vld [vmem:[%s762 + $0x78] sm:$0xff]
        %v779 = vld [vmem:[%s762 + $0x80] sm:$0xff]
        %v780 = vld [vmem:[%s762 + $0x88] sm:$0xff]
        %v781 = vld [vmem:[%s762 + $0x90] sm:$0xff]
        %v782 = vld [vmem:[%s762 + $0x98] sm:$0xff]
        %v783 = vld [vmem:[%s762 + $0xa0] sm:$0xff]
        %v784 = vld [vmem:[%s762 + $0xa8] sm:$0xff]
        %v785 = vld [vmem:[%s762 + $0xb0] sm:$0xff]
        %v786 = vld [vmem:[%s762 + $0xb8] sm:$0xff]
        %v787 = vld [vmem:[%s762 + $0xc0] sm:$0xff]
        %v788 = vld [vmem:[%s762 + $0xc8] sm:$0xff]
        %v789 = vld [vmem:[%s762 + $0xd0] sm:$0xff]
        %v790 = vld [vmem:[%s762 + $0xd8] sm:$0xff]
        %v791 = vld [vmem:[%s762 + $0xe0] sm:$0xff]
        %v792 = vld [vmem:[%s762 + $0xe8] sm:$0xff]
        %v793 = vld [vmem:[%s762 + $0xf0] sm:$0xff]
        %v794 = vld [vmem:[%s762 + $0xf8] sm:$0xff]
        %795 = vmatprep.subr.mxu0 0.0
        %796 = vmatpush1.msra.mxu0 %v763
        %797 = vmatprep.subr.mxu0 0.0
        %798 = vmatpush1.msra.mxu0 %v764
        %799 = vmatprep.subr.mxu0 0.0
        %800 = vmatpush1.msra.mxu0 %v765
        %801 = vmatprep.subr.mxu0 0.0
        %802 = vmatpush1.msra.mxu0 %v766
        %803 = vmatprep.subr.mxu0 0.0
        %804 = vmatpush1.msra.mxu0 %v767
        %805 = vmatprep.subr.mxu0 0.0
        %806 = vmatpush1.msra.mxu0 %v768
        %807 = vmatprep.subr.mxu0 0.0
        %808 = vmatpush1.msra.mxu0 %v769
        %809 = vmatprep.subr.mxu0 0.0
        %810 = vmatpush1.msra.mxu0 %v770
        %811 = vmatprep.subr.mxu0 0.0
        %812 = vmatpush1.msra.mxu0 %v771
        %813 = vmatprep.subr.mxu0 0.0
        %814 = vmatpush1.msra.mxu0 %v772
        %815 = vmatprep.subr.mxu0 0.0
        %816 = vmatpush1.msra.mxu0 %v773
        %817 = vmatprep.subr.mxu0 0.0
        %818 = vmatpush1.msra.mxu0 %v774
        %819 = vmatprep.subr.mxu0 0.0
        %820 = vmatpush1.msra.mxu0 %v775
        %821 = vmatprep.subr.mxu0 0.0
        %822 = vmatpush1.msra.mxu0 %v776
        %823 = vmatprep.subr.mxu0 0.0
        %824 = vmatpush1.msra.mxu0 %v777
        %825 = vmatprep.subr.mxu0 0.0
        %826 = vmatpush1.msra.mxu0 %v778
        %827 = vmatprep.subr.mxu0 0.0
        %828 = vmatpush1.msra.mxu0 %v779
        %829 = vmatprep.subr.mxu0 0.0
        %830 = vmatpush1.msra.mxu0 %v780
        %831 = vmatprep.subr.mxu0 0.0
        %832 = vmatpush1.msra.mxu0 %v781
        %833 = vmatprep.subr.mxu0 0.0
        %834 = vmatpush1.msra.mxu0 %v782
        %835 = vmatprep.subr.mxu0 0.0
        %836 = vmatpush1.msra.mxu0 %v783
        %837 = vmatprep.subr.mxu0 0.0
        %838 = vmatpush1.msra.mxu0 %v784
        %839 = vmatprep.subr.mxu0 0.0
        %840 = vmatpush1.msra.mxu0 %v785
        %841 = vmatprep.subr.mxu0 0.0
        %842 = vmatpush1.msra.mxu0 %v786
        %843 = vmatprep.subr.mxu0 0.0
        %844 = vmatpush1.msra.mxu0 %v787
        %845 = vmatprep.subr.mxu0 0.0
        %846 = vmatpush1.msra.mxu0 %v788
        %847 = vmatprep.subr.mxu0 0.0
        %848 = vmatpush1.msra.mxu0 %v789
        %849 = vmatprep.subr.mxu0 0.0
        %850 = vmatpush1.msra.mxu0 %v790
        %851 = vmatprep.subr.mxu0 0.0
        %852 = vmatpush1.msra.mxu0 %v791
        %853 = vmatprep.subr.mxu0 0.0
        %854 = vmatpush1.msra.mxu0 %v792
        %855 = vmatprep.subr.mxu0 0.0
        %856 = vmatpush1.msra.mxu0 %v793
        %857 = vmatprep.subr.mxu0 0.0
        %858 = vmatpush1.msra.mxu0 %v794
        %859 = vmatprep.mubr.f32.mxu0 %v415
        %860 = vmatmul.mubr.f32.gmra.mrb[0].mxu0 %v414
        %v861 = vpop.f32.mrb[0].mxu0
        %v862 = vadd.f32 0.0, %v861
        %v863 = vpop.f32.mrb[0].mxu0
        %864 = vdwg.mxu0
        %v867 = vunpack.c.l.s4 1966171168
        %v868 = vunpack.c.0.s8 %v867
        %v869 = vlaneseq
        %v870 = vshrl.u32 %v869, 7
        %v871 = vsub.s32 %v868, %v870
        %v872 = vrot.slane %v862, %v871
        %v873 = vcombine.high %v872, %v872
        %v875 = vunpack.c.l.s4 1966171168
        %v876 = vunpack.c.0.s8 %v875
        %v877 = vlaneseq
        %v878 = vshrl.u32 %v877, 7
        %v879 = vsub.s32 %v876, %v878
        %v880 = vrot.slane %v873, %v879
        %v881 = vcombine.high %v880, %v880
        %v883 = vadd.f32 %v761, %v881
        %s884 = scalar_lea.vmem %s3, 1024
        %v885 = vld [vmem:[%s884] sm:$0xff]
        %v886 = vld [vmem:[%s884 + $0x8] sm:$0xff]
        %v887 = vld [vmem:[%s884 + $0x10] sm:$0xff]
        %v888 = vld [vmem:[%s884 + $0x18] sm:$0xff]
        %v889 = vld [vmem:[%s884 + $0x20] sm:$0xff]
        %v890 = vld [vmem:[%s884 + $0x28] sm:$0xff]
        %v891 = vld [vmem:[%s884 + $0x30] sm:$0xff]
        %v892 = vld [vmem:[%s884 + $0x38] sm:$0xff]
        %v893 = vld [vmem:[%s884 + $0x40] sm:$0xff]
        %v894 = vld [vmem:[%s884 + $0x48] sm:$0xff]
        %v895 = vld [vmem:[%s884 + $0x50] sm:$0xff]
        %v896 = vld [vmem:[%s884 + $0x58] sm:$0xff]
        %v897 = vld [vmem:[%s884 + $0x60] sm:$0xff]
        %v898 = vld [vmem:[%s884 + $0x68] sm:$0xff]
        %v899 = vld [vmem:[%s884 + $0x70] sm:$0xff]
        %v900 = vld [vmem:[%s884 + $0x78] sm:$0xff]
        %v901 = vld [vmem:[%s884 + $0x80] sm:$0xff]
        %v902 = vld [vmem:[%s884 + $0x88] sm:$0xff]
        %v903 = vld [vmem:[%s884 + $0x90] sm:$0xff]
        %v904 = vld [vmem:[%s884 + $0x98] sm:$0xff]
        %v905 = vld [vmem:[%s884 + $0xa0] sm:$0xff]
        %v906 = vld [vmem:[%s884 + $0xa8] sm:$0xff]
        %v907 = vld [vmem:[%s884 + $0xb0] sm:$0xff]
        %v908 = vld [vmem:[%s884 + $0xb8] sm:$0xff]
        %v909 = vld [vmem:[%s884 + $0xc0] sm:$0xff]
        %v910 = vld [vmem:[%s884 + $0xc8] sm:$0xff]
        %v911 = vld [vmem:[%s884 + $0xd0] sm:$0xff]
        %v912 = vld [vmem:[%s884 + $0xd8] sm:$0xff]
        %v913 = vld [vmem:[%s884 + $0xe0] sm:$0xff]
        %v914 = vld [vmem:[%s884 + $0xe8] sm:$0xff]
        %v915 = vld [vmem:[%s884 + $0xf0] sm:$0xff]
        %v916 = vld [vmem:[%s884 + $0xf8] sm:$0xff]
        %917 = vmatprep.subr.mxu0 0.0
        %918 = vmatpush1.msra.mxu0 %v885
        %919 = vmatprep.subr.mxu0 0.0
        %920 = vmatpush1.msra.mxu0 %v886
        %921 = vmatprep.subr.mxu0 0.0
        %922 = vmatpush1.msra.mxu0 %v887
        %923 = vmatprep.subr.mxu0 0.0
        %924 = vmatpush1.msra.mxu0 %v888
        %925 = vmatprep.subr.mxu0 0.0
        %926 = vmatpush1.msra.mxu0 %v889
        %927 = vmatprep.subr.mxu0 0.0
        %928 = vmatpush1.msra.mxu0 %v890
        %929 = vmatprep.subr.mxu0 0.0
        %930 = vmatpush1.msra.mxu0 %v891
        %931 = vmatprep.subr.mxu0 0.0
        %932 = vmatpush1.msra.mxu0 %v892
        %933 = vmatprep.subr.mxu0 0.0
        %934 = vmatpush1.msra.mxu0 %v893
        %935 = vmatprep.subr.mxu0 0.0
        %936 = vmatpush1.msra.mxu0 %v894
        %937 = vmatprep.subr.mxu0 0.0
        %938 = vmatpush1.msra.mxu0 %v895
        %939 = vmatprep.subr.mxu0 0.0
        %940 = vmatpush1.msra.mxu0 %v896
        %941 = vmatprep.subr.mxu0 0.0
        %942 = vmatpush1.msra.mxu0 %v897
        %943 = vmatprep.subr.mxu0 0.0
        %944 = vmatpush1.msra.mxu0 %v898
        %945 = vmatprep.subr.mxu0 0.0
        %946 = vmatpush1.msra.mxu0 %v899
        %947 = vmatprep.subr.mxu0 0.0
        %948 = vmatpush1.msra.mxu0 %v900
        %949 = vmatprep.subr.mxu0 0.0
        %950 = vmatpush1.msra.mxu0 %v901
        %951 = vmatprep.subr.mxu0 0.0
        %952 = vmatpush1.msra.mxu0 %v902
        %953 = vmatprep.subr.mxu0 0.0
        %954 = vmatpush1.msra.mxu0 %v903
        %955 = vmatprep.subr.mxu0 0.0
        %956 = vmatpush1.msra.mxu0 %v904
        %957 = vmatprep.subr.mxu0 0.0
        %958 = vmatpush1.msra.mxu0 %v905
        %959 = vmatprep.subr.mxu0 0.0
        %960 = vmatpush1.msra.mxu0 %v906
        %961 = vmatprep.subr.mxu0 0.0
        %962 = vmatpush1.msra.mxu0 %v907
        %963 = vmatprep.subr.mxu0 0.0
        %964 = vmatpush1.msra.mxu0 %v908
        %965 = vmatprep.subr.mxu0 0.0
        %966 = vmatpush1.msra.mxu0 %v909
        %967 = vmatprep.subr.mxu0 0.0
        %968 = vmatpush1.msra.mxu0 %v910
        %969 = vmatprep.subr.mxu0 0.0
        %970 = vmatpush1.msra.mxu0 %v911
        %971 = vmatprep.subr.mxu0 0.0
        %972 = vmatpush1.msra.mxu0 %v912
        %973 = vmatprep.subr.mxu0 0.0
        %974 = vmatpush1.msra.mxu0 %v913
        %975 = vmatprep.subr.mxu0 0.0
        %976 = vmatpush1.msra.mxu0 %v914
        %977 = vmatprep.subr.mxu0 0.0
        %978 = vmatpush1.msra.mxu0 %v915
        %979 = vmatprep.subr.mxu0 0.0
        %980 = vmatpush1.msra.mxu0 %v916
        %981 = vmatprep.mubr.f32.mxu0 %v415
        %982 = vmatmul.mubr.f32.gmra.mrb[0].mxu0 %v414
        %v983 = vpop.f32.mrb[0].mxu0
        %v984 = vadd.f32 0.0, %v983
        %v985 = vpop.f32.mrb[0].mxu0
        %986 = vdwg.mxu0
        %v988 = vcombine.high %v984, %v984
        %v990 = vunpack.c.l.s4 1966171168
        %v991 = vunpack.c.0.s8 %v990
        %v992 = vlaneseq
        %v993 = vshrl.u32 %v992, 7
        %v994 = vsub.s32 %v991, %v993
        %v995 = vrot.slane %v988, %v994
        %v997 = vunpack.c.l.s4 1966171168
        %v998 = vunpack.c.0.s8 %v997
        %v999 = vlaneseq
        %v1000 = vshrl.u32 %v999, 7
        %v1001 = vsub.s32 %v998, %v1000
        %v1002 = vrot.slane %v995, %v1001
        %v1004 = vadd.f32 %v883, %v1002
        %s1005 = scalar_lea.vmem %s3, 1280
        %v1006 = vld [vmem:[%s1005] sm:$0xff]
        %v1007 = vld [vmem:[%s1005 + $0x8] sm:$0xff]
        %v1008 = vld [vmem:[%s1005 + $0x10] sm:$0xff]
        %v1009 = vld [vmem:[%s1005 + $0x18] sm:$0xff]
        %v1010 = vld [vmem:[%s1005 + $0x20] sm:$0xff]
        %v1011 = vld [vmem:[%s1005 + $0x28] sm:$0xff]
        %v1012 = vld [vmem:[%s1005 + $0x30] sm:$0xff]
        %v1013 = vld [vmem:[%s1005 + $0x38] sm:$0xff]
        %v1014 = vld [vmem:[%s1005 + $0x40] sm:$0xff]
        %v1015 = vld [vmem:[%s1005 + $0x48] sm:$0xff]
        %v1016 = vld [vmem:[%s1005 + $0x50] sm:$0xff]
        %v1017 = vld [vmem:[%s1005 + $0x58] sm:$0xff]
        %v1018 = vld [vmem:[%s1005 + $0x60] sm:$0xff]
        %v1019 = vld [vmem:[%s1005 + $0x68] sm:$0xff]
        %v1020 = vld [vmem:[%s1005 + $0x70] sm:$0xff]
        %v1021 = vld [vmem:[%s1005 + $0x78] sm:$0xff]
        %v1022 = vld [vmem:[%s1005 + $0x80] sm:$0xff]
        %v1023 = vld [vmem:[%s1005 + $0x88] sm:$0xff]
        %v1024 = vld [vmem:[%s1005 + $0x90] sm:$0xff]
        %v1025 = vld [vmem:[%s1005 + $0x98] sm:$0xff]
        %v1026 = vld [vmem:[%s1005 + $0xa0] sm:$0xff]
        %v1027 = vld [vmem:[%s1005 + $0xa8] sm:$0xff]
        %v1028 = vld [vmem:[%s1005 + $0xb0] sm:$0xff]
        %v1029 = vld [vmem:[%s1005 + $0xb8] sm:$0xff]
        %v1030 = vld [vmem:[%s1005 + $0xc0] sm:$0xff]
        %v1031 = vld [vmem:[%s1005 + $0xc8] sm:$0xff]
        %v1032 = vld [vmem:[%s1005 + $0xd0] sm:$0xff]
        %v1033 = vld [vmem:[%s1005 + $0xd8] sm:$0xff]
        %v1034 = vld [vmem:[%s1005 + $0xe0] sm:$0xff]
        %v1035 = vld [vmem:[%s1005 + $0xe8] sm:$0xff]
        %v1036 = vld [vmem:[%s1005 + $0xf0] sm:$0xff]
        %v1037 = vld [vmem:[%s1005 + $0xf8] sm:$0xff]
        %1038 = vmatprep.subr.mxu0 0.0
        %1039 = vmatpush1.msra.mxu0 %v1006
        %1040 = vmatprep.subr.mxu0 0.0
        %1041 = vmatpush1.msra.mxu0 %v1007
        %1042 = vmatprep.subr.mxu0 0.0
        %1043 = vmatpush1.msra.mxu0 %v1008
        %1044 = vmatprep.subr.mxu0 0.0
        %1045 = vmatpush1.msra.mxu0 %v1009
        %1046 = vmatprep.subr.mxu0 0.0
        %1047 = vmatpush1.msra.mxu0 %v1010
        %1048 = vmatprep.subr.mxu0 0.0
        %1049 = vmatpush1.msra.mxu0 %v1011
        %1050 = vmatprep.subr.mxu0 0.0
        %1051 = vmatpush1.msra.mxu0 %v1012
        %1052 = vmatprep.subr.mxu0 0.0
        %1053 = vmatpush1.msra.mxu0 %v1013
        %1054 = vmatprep.subr.mxu0 0.0
        %1055 = vmatpush1.msra.mxu0 %v1014
        %1056 = vmatprep.subr.mxu0 0.0
        %1057 = vmatpush1.msra.mxu0 %v1015
        %1058 = vmatprep.subr.mxu0 0.0
        %1059 = vmatpush1.msra.mxu0 %v1016
        %1060 = vmatprep.subr.mxu0 0.0
        %1061 = vmatpush1.msra.mxu0 %v1017
        %1062 = vmatprep.subr.mxu0 0.0
        %1063 = vmatpush1.msra.mxu0 %v1018
        %1064 = vmatprep.subr.mxu0 0.0
        %1065 = vmatpush1.msra.mxu0 %v1019
        %1066 = vmatprep.subr.mxu0 0.0
        %1067 = vmatpush1.msra.mxu0 %v1020
        %1068 = vmatprep.subr.mxu0 0.0
        %1069 = vmatpush1.msra.mxu0 %v1021
        %1070 = vmatprep.subr.mxu0 0.0
        %1071 = vmatpush1.msra.mxu0 %v1022
        %1072 = vmatprep.subr.mxu0 0.0
        %1073 = vmatpush1.msra.mxu0 %v1023
        %1074 = vmatprep.subr.mxu0 0.0
        %1075 = vmatpush1.msra.mxu0 %v1024
        %1076 = vmatprep.subr.mxu0 0.0
        %1077 = vmatpush1.msra.mxu0 %v1025
        %1078 = vmatprep.subr.mxu0 0.0
        %1079 = vmatpush1.msra.mxu0 %v1026
        %1080 = vmatprep.subr.mxu0 0.0
        %1081 = vmatpush1.msra.mxu0 %v1027
        %1082 = vmatprep.subr.mxu0 0.0
        %1083 = vmatpush1.msra.mxu0 %v1028
        %1084 = vmatprep.subr.mxu0 0.0
        %1085 = vmatpush1.msra.mxu0 %v1029
        %1086 = vmatprep.subr.mxu0 0.0
        %1087 = vmatpush1.msra.mxu0 %v1030
        %1088 = vmatprep.subr.mxu0 0.0
        %1089 = vmatpush1.msra.mxu0 %v1031
        %1090 = vmatprep.subr.mxu0 0.0
        %1091 = vmatpush1.msra.mxu0 %v1032
        %1092 = vmatprep.subr.mxu0 0.0
        %1093 = vmatpush1.msra.mxu0 %v1033
        %1094 = vmatprep.subr.mxu0 0.0
        %1095 = vmatpush1.msra.mxu0 %v1034
        %1096 = vmatprep.subr.mxu0 0.0
        %1097 = vmatpush1.msra.mxu0 %v1035
        %1098 = vmatprep.subr.mxu0 0.0
        %1099 = vmatpush1.msra.mxu0 %v1036
        %1100 = vmatprep.subr.mxu0 0.0
        %1101 = vmatpush1.msra.mxu0 %v1037
        %1102 = vmatprep.mubr.f32.mxu0 %v415
        %1103 = vmatmul.mubr.f32.gmra.mrb[0].mxu0 %v414
        %v1104 = vpop.f32.mrb[0].mxu0
        %v1105 = vadd.f32 0.0, %v1104
        %v1106 = vpop.f32.mrb[0].mxu0
        %1107 = vdwg.mxu0
        %v1109 = vcombine.high %v1105, %v1105
        %v1111 = vunpack.c.l.s4 1966171168
        %v1112 = vunpack.c.0.s8 %v1111
        %v1113 = vlaneseq
        %v1114 = vshrl.u32 %v1113, 7
        %v1115 = vsub.s32 %v1112, %v1114
        %v1116 = vrot.slane %v1109, %v1115
        %v1117 = vcombine.high %v1116, %v1116
        %v1119 = vunpack.c.l.s4 1966171168
        %v1120 = vunpack.c.0.s8 %v1119
        %v1121 = vlaneseq
        %v1122 = vshrl.u32 %v1121, 7
        %v1123 = vsub.s32 %v1120, %v1122
        %v1124 = vrot.slane %v1117, %v1123
        %v1126 = vadd.f32 %v1004, %v1124
        %s1127 = scalar_lea.vmem %s3, 1536
        %v1128 = vld [vmem:[%s1127] sm:$0xff]
        %v1129 = vld [vmem:[%s1127 + $0x8] sm:$0xff]
        %v1130 = vld [vmem:[%s1127 + $0x10] sm:$0xff]
        %v1131 = vld [vmem:[%s1127 + $0x18] sm:$0xff]
        %v1132 = vld [vmem:[%s1127 + $0x20] sm:$0xff]
        %v1133 = vld [vmem:[%s1127 + $0x28] sm:$0xff]
        %v1134 = vld [vmem:[%s1127 + $0x30] sm:$0xff]
        %v1135 = vld [vmem:[%s1127 + $0x38] sm:$0xff]
        %v1136 = vld [vmem:[%s1127 + $0x40] sm:$0xff]
        %v1137 = vld [vmem:[%s1127 + $0x48] sm:$0xff]
        %v1138 = vld [vmem:[%s1127 + $0x50] sm:$0xff]
        %v1139 = vld [vmem:[%s1127 + $0x58] sm:$0xff]
        %v1140 = vld [vmem:[%s1127 + $0x60] sm:$0xff]
        %v1141 = vld [vmem:[%s1127 + $0x68] sm:$0xff]
        %v1142 = vld [vmem:[%s1127 + $0x70] sm:$0xff]
        %v1143 = vld [vmem:[%s1127 + $0x78] sm:$0xff]
        %v1144 = vld [vmem:[%s1127 + $0x80] sm:$0xff]
        %v1145 = vld [vmem:[%s1127 + $0x88] sm:$0xff]
        %v1146 = vld [vmem:[%s1127 + $0x90] sm:$0xff]
        %v1147 = vld [vmem:[%s1127 + $0x98] sm:$0xff]
        %v1148 = vld [vmem:[%s1127 + $0xa0] sm:$0xff]
        %v1149 = vld [vmem:[%s1127 + $0xa8] sm:$0xff]
        %v1150 = vld [vmem:[%s1127 + $0xb0] sm:$0xff]
        %v1151 = vld [vmem:[%s1127 + $0xb8] sm:$0xff]
        %v1152 = vld [vmem:[%s1127 + $0xc0] sm:$0xff]
        %v1153 = vld [vmem:[%s1127 + $0xc8] sm:$0xff]
        %v1154 = vld [vmem:[%s1127 + $0xd0] sm:$0xff]
        %v1155 = vld [vmem:[%s1127 + $0xd8] sm:$0xff]
        %v1156 = vld [vmem:[%s1127 + $0xe0] sm:$0xff]
        %v1157 = vld [vmem:[%s1127 + $0xe8] sm:$0xff]
        %v1158 = vld [vmem:[%s1127 + $0xf0] sm:$0xff]
        %v1159 = vld [vmem:[%s1127 + $0xf8] sm:$0xff]
        %1160 = vmatprep.subr.mxu0 0.0
        %1161 = vmatpush1.msra.mxu0 %v1128
        %1162 = vmatprep.subr.mxu0 0.0
        %1163 = vmatpush1.msra.mxu0 %v1129
        %1164 = vmatprep.subr.mxu0 0.0
        %1165 = vmatpush1.msra.mxu0 %v1130
        %1166 = vmatprep.subr.mxu0 0.0
        %1167 = vmatpush1.msra.mxu0 %v1131
        %1168 = vmatprep.subr.mxu0 0.0
        %1169 = vmatpush1.msra.mxu0 %v1132
        %1170 = vmatprep.subr.mxu0 0.0
        %1171 = vmatpush1.msra.mxu0 %v1133
        %1172 = vmatprep.subr.mxu0 0.0
        %1173 = vmatpush1.msra.mxu0 %v1134
        %1174 = vmatprep.subr.mxu0 0.0
        %1175 = vmatpush1.msra.mxu0 %v1135
        %1176 = vmatprep.subr.mxu0 0.0
        %1177 = vmatpush1.msra.mxu0 %v1136
        %1178 = vmatprep.subr.mxu0 0.0
        %1179 = vmatpush1.msra.mxu0 %v1137
        %1180 = vmatprep.subr.mxu0 0.0
        %1181 = vmatpush1.msra.mxu0 %v1138
        %1182 = vmatprep.subr.mxu0 0.0
        %1183 = vmatpush1.msra.mxu0 %v1139
        %1184 = vmatprep.subr.mxu0 0.0
        %1185 = vmatpush1.msra.mxu0 %v1140
        %1186 = vmatprep.subr.mxu0 0.0
        %1187 = vmatpush1.msra.mxu0 %v1141
        %1188 = vmatprep.subr.mxu0 0.0
        %1189 = vmatpush1.msra.mxu0 %v1142
        %1190 = vmatprep.subr.mxu0 0.0
        %1191 = vmatpush1.msra.mxu0 %v1143
        %1192 = vmatprep.subr.mxu0 0.0
        %1193 = vmatpush1.msra.mxu0 %v1144
        %1194 = vmatprep.subr.mxu0 0.0
        %1195 = vmatpush1.msra.mxu0 %v1145
        %1196 = vmatprep.subr.mxu0 0.0
        %1197 = vmatpush1.msra.mxu0 %v1146
        %1198 = vmatprep.subr.mxu0 0.0
        %1199 = vmatpush1.msra.mxu0 %v1147
        %1200 = vmatprep.subr.mxu0 0.0
        %1201 = vmatpush1.msra.mxu0 %v1148
        %1202 = vmatprep.subr.mxu0 0.0
        %1203 = vmatpush1.msra.mxu0 %v1149
        %1204 = vmatprep.subr.mxu0 0.0
        %1205 = vmatpush1.msra.mxu0 %v1150
        %1206 = vmatprep.subr.mxu0 0.0
        %1207 = vmatpush1.msra.mxu0 %v1151
        %1208 = vmatprep.subr.mxu0 0.0
        %1209 = vmatpush1.msra.mxu0 %v1152
        %1210 = vmatprep.subr.mxu0 0.0
        %1211 = vmatpush1.msra.mxu0 %v1153
        %1212 = vmatprep.subr.mxu0 0.0
        %1213 = vmatpush1.msra.mxu0 %v1154
        %1214 = vmatprep.subr.mxu0 0.0
        %1215 = vmatpush1.msra.mxu0 %v1155
        %1216 = vmatprep.subr.mxu0 0.0
        %1217 = vmatpush1.msra.mxu0 %v1156
        %1218 = vmatprep.subr.mxu0 0.0
        %1219 = vmatpush1.msra.mxu0 %v1157
        %1220 = vmatprep.subr.mxu0 0.0
        %1221 = vmatpush1.msra.mxu0 %v1158
        %1222 = vmatprep.subr.mxu0 0.0
        %1223 = vmatpush1.msra.mxu0 %v1159
        %1224 = vmatprep.mubr.f32.mxu0 %v415
        %1225 = vmatmul.mubr.f32.gmra.mrb[0].mxu0 %v414
        %v1226 = vpop.f32.mrb[0].mxu0
        %v1227 = vadd.f32 0.0, %v1226
        %v1228 = vpop.f32.mrb[0].mxu0
        %1229 = vdwg.mxu0
        %v1231 = vcombine.high %v1227, %v1227
        %v1233 = vunpack.c.l.s4 1966171168
        %v1234 = vunpack.c.0.s8 %v1233
        %v1235 = vlaneseq
        %v1236 = vshrl.u32 %v1235, 7
        %v1237 = vsub.s32 %v1234, %v1236
        %v1238 = vrot.slane %v1231, %v1237
        %v1240 = vunpack.c.l.s4 1966171168
        %v1241 = vunpack.c.0.s8 %v1240
        %v1242 = vlaneseq
        %v1243 = vshrl.u32 %v1242, 7
        %v1244 = vsub.s32 %v1241, %v1243
        %v1245 = vrot.slane %v1238, %v1244
        %v1246 = vcombine.high %v1245, %v1245
        %v1248 = vadd.f32 %v1126, %v1246
        %s1249 = scalar_lea.vmem %s3, 1792
        %v1250 = vld [vmem:[%s1249] sm:$0xff]
        %v1251 = vld [vmem:[%s1249 + $0x8] sm:$0xff]
        %v1252 = vld [vmem:[%s1249 + $0x10] sm:$0xff]
        %v1253 = vld [vmem:[%s1249 + $0x18] sm:$0xff]
        %v1254 = vld [vmem:[%s1249 + $0x20] sm:$0xff]
        %v1255 = vld [vmem:[%s1249 + $0x28] sm:$0xff]
        %v1256 = vld [vmem:[%s1249 + $0x30] sm:$0xff]
        %v1257 = vld [vmem:[%s1249 + $0x38] sm:$0xff]
        %v1258 = vld [vmem:[%s1249 + $0x40] sm:$0xff]
        %v1259 = vld [vmem:[%s1249 + $0x48] sm:$0xff]
        %v1260 = vld [vmem:[%s1249 + $0x50] sm:$0xff]
        %v1261 = vld [vmem:[%s1249 + $0x58] sm:$0xff]
        %v1262 = vld [vmem:[%s1249 + $0x60] sm:$0xff]
        %v1263 = vld [vmem:[%s1249 + $0x68] sm:$0xff]
        %v1264 = vld [vmem:[%s1249 + $0x70] sm:$0xff]
        %v1265 = vld [vmem:[%s1249 + $0x78] sm:$0xff]
        %v1266 = vld [vmem:[%s1249 + $0x80] sm:$0xff]
        %v1267 = vld [vmem:[%s1249 + $0x88] sm:$0xff]
        %v1268 = vld [vmem:[%s1249 + $0x90] sm:$0xff]
        %v1269 = vld [vmem:[%s1249 + $0x98] sm:$0xff]
        %v1270 = vld [vmem:[%s1249 + $0xa0] sm:$0xff]
        %v1271 = vld [vmem:[%s1249 + $0xa8] sm:$0xff]
        %v1272 = vld [vmem:[%s1249 + $0xb0] sm:$0xff]
        %v1273 = vld [vmem:[%s1249 + $0xb8] sm:$0xff]
        %v1274 = vld [vmem:[%s1249 + $0xc0] sm:$0xff]
        %v1275 = vld [vmem:[%s1249 + $0xc8] sm:$0xff]
        %v1276 = vld [vmem:[%s1249 + $0xd0] sm:$0xff]
        %v1277 = vld [vmem:[%s1249 + $0xd8] sm:$0xff]
        %v1278 = vld [vmem:[%s1249 + $0xe0] sm:$0xff]
        %v1279 = vld [vmem:[%s1249 + $0xe8] sm:$0xff]
        %v1280 = vld [vmem:[%s1249 + $0xf0] sm:$0xff]
        %v1281 = vld [vmem:[%s1249 + $0xf8] sm:$0xff]
        %1282 = vmatprep.subr.mxu0 0.0
        %1283 = vmatpush1.msra.mxu0 %v1250
        %1284 = vmatprep.subr.mxu0 0.0
        %1285 = vmatpush1.msra.mxu0 %v1251
        %1286 = vmatprep.subr.mxu0 0.0
        %1287 = vmatpush1.msra.mxu0 %v1252
        %1288 = vmatprep.subr.mxu0 0.0
        %1289 = vmatpush1.msra.mxu0 %v1253
        %1290 = vmatprep.subr.mxu0 0.0
        %1291 = vmatpush1.msra.mxu0 %v1254
        %1292 = vmatprep.subr.mxu0 0.0
        %1293 = vmatpush1.msra.mxu0 %v1255
        %1294 = vmatprep.subr.mxu0 0.0
        %1295 = vmatpush1.msra.mxu0 %v1256
        %1296 = vmatprep.subr.mxu0 0.0
        %1297 = vmatpush1.msra.mxu0 %v1257
        %1298 = vmatprep.subr.mxu0 0.0
        %1299 = vmatpush1.msra.mxu0 %v1258
        %1300 = vmatprep.subr.mxu0 0.0
        %1301 = vmatpush1.msra.mxu0 %v1259
        %1302 = vmatprep.subr.mxu0 0.0
        %1303 = vmatpush1.msra.mxu0 %v1260
        %1304 = vmatprep.subr.mxu0 0.0
        %1305 = vmatpush1.msra.mxu0 %v1261
        %1306 = vmatprep.subr.mxu0 0.0
        %1307 = vmatpush1.msra.mxu0 %v1262
        %1308 = vmatprep.subr.mxu0 0.0
        %1309 = vmatpush1.msra.mxu0 %v1263
        %1310 = vmatprep.subr.mxu0 0.0
        %1311 = vmatpush1.msra.mxu0 %v1264
        %1312 = vmatprep.subr.mxu0 0.0
        %1313 = vmatpush1.msra.mxu0 %v1265
        %1314 = vmatprep.subr.mxu0 0.0
        %1315 = vmatpush1.msra.mxu0 %v1266
        %1316 = vmatprep.subr.mxu0 0.0
        %1317 = vmatpush1.msra.mxu0 %v1267
        %1318 = vmatprep.subr.mxu0 0.0
        %1319 = vmatpush1.msra.mxu0 %v1268
        %1320 = vmatprep.subr.mxu0 0.0
        %1321 = vmatpush1.msra.mxu0 %v1269
        %1322 = vmatprep.subr.mxu0 0.0
        %1323 = vmatpush1.msra.mxu0 %v1270
        %1324 = vmatprep.subr.mxu0 0.0
        %1325 = vmatpush1.msra.mxu0 %v1271
        %1326 = vmatprep.subr.mxu0 0.0
        %1327 = vmatpush1.msra.mxu0 %v1272
        %1328 = vmatprep.subr.mxu0 0.0
        %1329 = vmatpush1.msra.mxu0 %v1273
        %1330 = vmatprep.subr.mxu0 0.0
        %1331 = vmatpush1.msra.mxu0 %v1274
        %1332 = vmatprep.subr.mxu0 0.0
        %1333 = vmatpush1.msra.mxu0 %v1275
        %1334 = vmatprep.subr.mxu0 0.0
        %1335 = vmatpush1.msra.mxu0 %v1276
        %1336 = vmatprep.subr.mxu0 0.0
        %1337 = vmatpush1.msra.mxu0 %v1277
        %1338 = vmatprep.subr.mxu0 0.0
        %1339 = vmatpush1.msra.mxu0 %v1278
        %1340 = vmatprep.subr.mxu0 0.0
        %1341 = vmatpush1.msra.mxu0 %v1279
        %1342 = vmatprep.subr.mxu0 0.0
        %1343 = vmatpush1.msra.mxu0 %v1280
        %1344 = vmatprep.subr.mxu0 0.0
        %1345 = vmatpush1.msra.mxu0 %v1281
        %1346 = vmatprep.mubr.f32.mxu0 %v415
        %1347 = vmatmul.mubr.f32.gmra.mrb[0].mxu0 %v414
        %v1348 = vpop.f32.mrb[0].mxu0
        %v1349 = vadd.f32 0.0, %v1348
        %v1350 = vpop.f32.mrb[0].mxu0
        %1351 = vdwg.mxu0
        %v1353 = vcombine.high %v1349, %v1349
        %v1355 = vunpack.c.l.s4 1966171168
        %v1356 = vunpack.c.0.s8 %v1355
        %v1357 = vlaneseq
        %v1358 = vshrl.u32 %v1357, 7
        %v1359 = vsub.s32 %v1356, %v1358
        %v1360 = vrot.slane %v1353, %v1359
        %v1361 = vcombine.high %v1360, %v1360
        %v1363 = vunpack.c.l.s4 1966171168
        %v1364 = vunpack.c.0.s8 %v1363
        %v1365 = vlaneseq
        %v1366 = vshrl.u32 %v1365, 7
        %v1367 = vsub.s32 %v1364, %v1366
        %v1368 = vrot.slane %v1361, %v1367
        %v1369 = vcombine.high %v1368, %v1368
        %v1371 = vadd.f32 %v1248, %v1369
        %v1372 = vmax.f32 %v1371, 0.0
        %v1373 = vld [vmem:[%s5] sm:$0xff]
        %v1374 = vld [vmem:[%s5 + $0x8] sm:$0xff]
        %v1375 = vld [vmem:[%s5 + $0x10] sm:$0xff]
        %v1376 = vld [vmem:[%s5 + $0x18] sm:$0xff]
        %v1377 = vld [vmem:[%s6] sm:$0x1]
        %vm1378 = vcmask 261120
        %v1380 = vsel %vm1378, %v1372, 0
        %1382 = vmatprep.subr.mxu0 0.0
        %1383 = vmatpush1.msra.mxu0 %v1373
        %1384 = vmatprep.subr.mxu0 0.0
        %1385 = vmatpush1.msra.mxu0 %v1374
        %1386 = vmatprep.subr.mxu0 0.0
        %1387 = vmatpush1.msra.mxu0 %v1375
        %1388 = vmatprep.subr.mxu0 0.0
        %1389 = vmatpush1.msra.mxu0 %v1376
        %1390 = vmatprep.subr.mxu0 0.0
        %1391 = vmatpush1.msra.mxu0 0.0
        %1392 = vmatprep.subr.mxu0 0.0
        %1393 = vmatpush1.msra.mxu0 0.0
        %1394 = vmatprep.subr.mxu0 0.0
        %1395 = vmatpush1.msra.mxu0 0.0
        %1396 = vmatprep.subr.mxu0 0.0
        %1397 = vmatpush1.msra.mxu0 0.0
        %1398 = vmatprep.subr.mxu0 0.0
        %1399 = vmatpush1.msra.mxu0 0.0
        %1400 = vmatprep.subr.mxu0 0.0
        %1401 = vmatpush1.msra.mxu0 0.0
        %1402 = vmatprep.subr.mxu0 0.0
        %1403 = vmatpush1.msra.mxu0 0.0
        %1404 = vmatprep.subr.mxu0 0.0
        %1405 = vmatpush1.msra.mxu0 0.0
        %1406 = vmatprep.subr.mxu0 0.0
        %1407 = vmatpush1.msra.mxu0 0.0
        %1408 = vmatprep.subr.mxu0 0.0
        %1409 = vmatpush1.msra.mxu0 0.0
        %1410 = vmatprep.subr.mxu0 0.0
        %1411 = vmatpush1.msra.mxu0 0.0
        %1412 = vmatprep.subr.mxu0 0.0
        %1413 = vmatpush1.msra.mxu0 0.0
        %1414 = vmatprep.subr.mxu0 0.0
        %1415 = vmatpush1.msra.mxu0 0.0
        %1416 = vmatprep.subr.mxu0 0.0
        %1417 = vmatpush1.msra.mxu0 0.0
        %1418 = vmatprep.subr.mxu0 0.0
        %1419 = vmatpush1.msra.mxu0 0.0
        %1420 = vmatprep.subr.mxu0 0.0
        %1421 = vmatpush1.msra.mxu0 0.0
        %1422 = vmatprep.subr.mxu0 0.0
        %1423 = vmatpush1.msra.mxu0 0.0
        %1424 = vmatprep.subr.mxu0 0.0
        %1425 = vmatpush1.msra.mxu0 0.0
        %1426 = vmatprep.subr.mxu0 0.0
        %1427 = vmatpush1.msra.mxu0 0.0
        %1428 = vmatprep.subr.mxu0 0.0
        %1429 = vmatpush1.msra.mxu0 0.0
        %1430 = vmatprep.subr.mxu0 0.0
        %1431 = vmatpush1.msra.mxu0 0.0
        %1432 = vmatprep.subr.mxu0 0.0
        %1433 = vmatpush1.msra.mxu0 0.0
        %1434 = vmatprep.subr.mxu0 0.0
        %1435 = vmatpush1.msra.mxu0 0.0
        %1436 = vmatprep.subr.mxu0 0.0
        %1437 = vmatpush1.msra.mxu0 0.0
        %1438 = vmatprep.subr.mxu0 0.0
        %1439 = vmatpush1.msra.mxu0 0.0
        %1440 = vmatprep.subr.mxu0 0.0
        %1441 = vmatpush1.msra.mxu0 0.0
        %1442 = vmatprep.subr.mxu0 0.0
        %1443 = vmatpush1.msra.mxu0 0.0
        %1444 = vmatprep.subr.mxu0 0.0
        %1445 = vmatpush1.msra.mxu0 0.0
        %1446 = vmatprep.mubr.f32.mxu0 0.0
        %1447 = vmatmul.mubr.f32.gmra.mrb[0].mxu0 %v1380
        %v1448 = vpop.f32.mrb[0].mxu0
        %v1449 = vadd.f32 %v1377, %v1448
        %v1450 = vpop.f32.mrb[0].mxu0
        %1451 = vdwg.mxu0
        %vm1452 = vcmask 73728
        %v1453 = vsel %vm1452, %v1449, -inf
        %1454 = vmax.xlane.f32.xlu0 %v1453
        %v1455 = vpop.xlane.xlu0 %1454
        %v1456 = vsub.f32 %v1449, %v1455
        %v1457 = vmul.f32 %v1456, 1.442695
        %v1458 = vpow.pop %v1457
        %v1459 = vsel %vm1452, %v1458, 0.0
        %1460 = vadd.xlane.f32.xlu0 %v1459
        %v1461 = vpop.xlane.xlu0 %1460
        %v1462 = vlog2.pop %v1461
        %v1463 = vmul.f32 %v1462, 0.6931472
        %v1464 = vsub.f32 %v1456, %v1463
        %1465 = vst.msk [vmem:[%s313] sm:$0x1] %vm1452, %v1464
        %s1466 = sand.u32 %s181, 1
        %s1467 = scalar_lea.sflag [#allocation4], %s1466
        %s1468 = sand.u32 %s181, 1
        %s1469 = scalar_lea.vmem [#allocation3], %s1468
        // Predicated region
        $region72: #{learner_forward.1} parent=66 // pred_check
          %p1470 = pneg %p191
        $region73: #{learner_forward.1} parent=66 // pred_check_branch
          %1472 = sbr.rel (%p1470) target = $region75
        $region74: #{learner_forward.1} parent=66 // pred_region
          %s1474 = ssub.s32 16, 16
          %1475 = vsyncadd %s1467, %s1474
          %s1476 = smul.addr %s21, 16
          %s1477 = scalar_lea.hbm %s7, %s1476
          %s1479 = sshll.u32 %s1469, 4
          %s1480 = int_to_ptr.vmem [resolvable:$true] %s1479
          %1482 = dma.vmem_to_hbm [thread:$0]  %s1480, 16, %s1477, %s1467
        $region75: #{learner_forward.1} parent=66 // pred_fallthru
          _
      $region67: #{learner_forward.1} parent=5 // pred_fallthru
        _
      %p1483 = scmp.le.s32.totalorder 2, %s16
      // Predicated region
      $region76: #{learner_forward.1} parent=5 // pred_check
        %p1484 = pneg %p1483
      $region77: #{learner_forward.1} parent=5 // pred_check_branch
        %1486 = sbr.rel (%p1484) target = $region79
      $region78: #{learner_forward.1} parent=5 // pred_region
        %s1487 = ssub.s32 %s16, 2
        // Predicated region
        $region80: #{learner_forward.1} parent=78 // pred_check
          %p1488 = pneg %p197
        $region81: #{learner_forward.1} parent=78 // pred_check_branch
          %1490 = sbr.rel (%p1488) target = $region83
        $region82: #{learner_forward.1} parent=78 // pred_region
          %s1491 = sand.u32 %s182, 1
          %s1492 = scalar_lea.sflag [#allocation4], %s1491
          %s1493 = sand.u32 %s182, 1
          %s1494 = scalar_lea.vmem [#allocation3], %s1493
          %1495 = dma.done %s1492, 16
        $region83: #{learner_forward.1} parent=78 // pred_fallthru
          _
      $region79: #{learner_forward.1} parent=5 // pred_fallthru
        _
    $region6: #{learner_forward.1} parent=1 // loop_footer
      %s20 = sadd.s32 1, %s16
    $region7: #{learner_forward.1} parent=1 // loop_footer_branch
      %15 = sbr.rel target = $region3
    $region8: #{learner_forward.1} parent=1 // loop_exit
      _
    %1496 = vsyncpa [#allocation4], 1
    %s1497 = scalar_lea.sflag [#allocation4], 1
    %1498 = vsyncpa %s1497, 1

</llo_original>
